<compile_context>
chip_gen: v5e
topology: v5e:2x2
jax: 0.10.0
libtpu: 0.0.40
codegen_flags: <defaults>
</compile_context>

<pallas_src>
import functools

import jax
import jax.numpy as jnp
from jax import lax
from jax.experimental import pallas as pl
from jax.experimental.pallas import tpu as pltpu


def _round_up(x, m):
    return ((x + m - 1) // m) * m


def _seghead_kernel(x_ref, w1_ref, b1_ref, w2_ref, b2_ref, o_ref, *,
                    tap_shifts, tile_pixels, halo):
    """One (image, pixel-tile) step; channels on sublanes, flat pixels on lanes.

    x_ref : (Cin, Lx)        zero-padded image, flat pixel index p = hp*Wp + wp
    w1_ref: (9, Cmid, Cin)   3x3 conv weights (BN scale folded in), tap-major
    b1_ref: (Cmid, 1)        folded BN bias (f32)
    w2_ref: (Ncls, Cmid)     1x1 conv weights
    b2_ref: (Ncls, 1)        1x1 conv bias (f32)
    o_ref : (Ncls, TP)       output tile over flat padded-pixel positions
    """
    t = pl.program_id(1)
    base = pl.multiple_of(t * tile_pixels, 128)
    # One aligned load of the tile + halo window; the 9 tap windows are static
    # in-register lane-shifted slices of it (in-kernel im2col, no HBM inflation).
    xw = x_ref[:, pl.ds(base, tile_pixels + halo)]

    cmid = w1_ref.shape[1]
    acc = jnp.zeros((cmid, tile_pixels), jnp.float32)
    for i, s in enumerate(tap_shifts):                       # static unroll, 9 taps
        acc = acc + jnp.dot(w1_ref[i], xw[:, s:s + tile_pixels],
                            preferred_element_type=jnp.float32)

    # Folded-BN bias + ReLU in f32 on the VPU (Dropout is identity in eval mode).
    y = jnp.maximum(acc + b1_ref[...], 0.0)

    # 1x1 conv as a second MXU matmul, plus bias.
    out = jnp.dot(w2_ref[...], y.astype(w2_ref.dtype),
                  preferred_element_type=jnp.float32) + b2_ref[...]
    o_ref[...] = out.astype(o_ref.dtype)


def _bilinear_matrix(n_in, n_out, dtype=jnp.float32):
    """Dense (n_out, n_in) matrix for F.interpolate(mode='bilinear', align_corners=True).

    Top edge is clamped (lo <= n_in-2, frac -> 1) so rows sum exactly to 1.
    """
    if n_in == 1:
        return jnp.ones((n_out, 1), dtype)
    if n_out == 1:
        src = jnp.zeros((1,), jnp.float32)
    else:
        src = jnp.arange(n_out, dtype=jnp.float32) * (n_in - 1) / (n_out - 1)
    lo = jnp.clip(jnp.floor(src).astype(jnp.int32), 0, n_in - 2)
    frac = src - lo.astype(jnp.float32)
    cols = jnp.arange(n_in, dtype=jnp.int32)
    r = ((cols[None, :] == lo[:, None]).astype(jnp.float32) * (1.0 - frac)[:, None]
         + (cols[None, :] == (lo + 1)[:, None]).astype(jnp.float32) * frac[:, None])
    return r.astype(dtype)


@functools.partial(jax.jit, static_argnames=("size", "compute_dtype", "tile_pixels"))
def segment_head_forward(x_nchw, w1, bn_gamma, bn_beta, bn_mean, bn_var,
                         w2, b2, size=None, eps=1e-5,
                         compute_dtype=jnp.bfloat16, tile_pixels=512):
    """x_nchw: (N, Cin, H, W) float32. Returns (N, Ncls, H, W) (or `size`) float32."""
    N, Cin, H, W = x_nchw.shape
    Cmid = w1.shape[0]
    Ncls = w2.shape[0]
    Hp, Wp = H + 2, W + 2
    Limg = Hp * Wp                                     # flat padded pixels per image

    # Lane-dense pixel tiling (multiples of 128); halo covers the largest tap shift.
    tp = _round_up(max(128, min(int(tile_pixels), _round_up(Limg, 128))), 128)
    num_tiles = pl.cdiv(Limg, tp)
    l_out = num_tiles * tp
    halo = _round_up(2 * Wp + 2, 128)
    l_x = l_out + halo

    # --- input: zero-pad spatially, flatten pixels, pad the flat tail.  No im2col:
    #     kernel input bytes stay ~1x the raw input (in bf16, half of f32).
    x_pad = jnp.pad(x_nchw, ((0, 0), (0, 0), (1, 1), (1, 1)))
    x_flat = x_pad.reshape(N, Cin, Limg).astype(compute_dtype)
    x_flat = jnp.pad(x_flat, ((0, 0), (0, 0), (0, l_x - Limg)))

    # --- fold BN into the 3x3 conv: bn(conv(x)) = conv(x, w*scale) + bias.
    inv_std = 1.0 / jnp.sqrt(bn_var + eps)
    scale = bn_gamma * inv_std                                     # (Cmid,)
    b1 = (bn_beta - bn_mean * scale).reshape(Cmid, 1).astype(jnp.float32)
    # PyTorch w1 (Cmid, Cin, 3, 3) -> tap-major (9, Cmid, Cin), tap = dy*3 + dx.
    w1_taps = jnp.transpose(w1, (2, 3, 0, 1)).reshape(9, Cmid, Cin)
    w1_taps = (w1_taps * scale[None, :, None]).astype(compute_dtype)
    w2_t = w2.reshape(Ncls, Cmid).astype(compute_dtype)
    b2_t = b2.reshape(Ncls, 1).astype(jnp.float32)

    # Output pixel (h, w) lives at flat index h*Wp + w and tap (dy, dx) reads
    # x_pad[h+dy, w+dx] = flat index (h*Wp + w) + dy*Wp + dx.
    tap_shifts = tuple(dy * Wp + dx for dy in range(3) for dx in range(3))

    kernel = functools.partial(_seghead_kernel, tap_shifts=tap_shifts,
                               tile_pixels=tp, halo=halo)

    csize = jnp.dtype(compute_dtype).itemsize
    flops = 2 * (9 * Cin * Cmid + Cmid * Ncls) * N * l_out
    bytes_accessed = int(N * Cin * l_x * csize + N * Ncls * l_out * 4
                         + (9 * Cmid * Cin + Ncls * Cmid) * csize
                         + (Cmid + Ncls) * 4)
    vmem_need = (2 * Cin * l_x * csize          # resident per-image input (dbl-buffered)
                 + 2 * Ncls * tp * 4            # output tiles (dbl-buffered)
                 + 3 * Cmid * tp * 4            # f32 accumulator / ReLU temporaries
                 + Cin * (tp + halo) * csize    # tap window
                 + (9 * Cmid * Cin + Ncls * Cmid) * csize + (Cmid + Ncls) * 4)
    vmem_limit = int(min(max(2 * vmem_need, 16 * 2 ** 20), 48 * 2 ** 20))

    out_flat = pl.pallas_call(
        kernel,
        out_shape=jax.ShapeDtypeStruct((N, Ncls, l_out), jnp.float32),
        grid_spec=pltpu.PrefetchScalarGridSpec(
            num_scalar_prefetch=0,
            grid=(N, num_tiles),
            in_specs=[
                # Per-image input slab: grid-invariant along the tile axis -> resident.
                pl.BlockSpec((None, Cin, l_x), lambda n, t: (n, 0, 0)),
                # Weights / biases: grid-invariant -> resident across the whole grid.
                pl.BlockSpec((9, Cmid, Cin), lambda n, t: (0, 0, 0)),
                pl.BlockSpec((Cmid, 1), lambda n, t: (0, 0)),
                pl.BlockSpec((Ncls, Cmid), lambda n, t: (0, 0)),
                pl.BlockSpec((Ncls, 1), lambda n, t: (0, 0)),
            ],
            out_specs=pl.BlockSpec((None, Ncls, tp), lambda n, t: (n, 0, t)),
        ),
        compiler_params=pltpu.CompilerParams(
            dimension_semantics=("parallel", "parallel"),
            vmem_limit_bytes=vmem_limit),
        cost_estimate=pl.CostEstimate(flops=flops, transcendentals=0,
                                      bytes_accessed=bytes_accessed),
    )(x_flat, w1_taps, b1, w2_t, b2_t)

    # Valid outputs sit at flat index h*Wp + w; drop padded rows/cols (Ncls is small).
    out = out_flat[:, :, :Limg].reshape(N, Ncls, Hp, Wp)[:, :, :H, :W]

    if size is not None:
        # Bilinear align_corners=True upsample as two small dense matmuls (MXU-friendly,
        # no 3-operand-einsum transposes).
        # TODO(synk): fuse the W-axis interpolation matmul into the kernel epilogue
        # (needs a row-aligned pixel tiling) to skip this HBM round trip for large sizes.
        Ho, Wo = size
        ry = _bilinear_matrix(H, Ho, out.dtype)        # (Ho, H)
        rx = _bilinear_matrix(W, Wo, out.dtype)        # (Wo, W)
        out = jnp.dot(out.reshape(N * Ncls * H, W), rx.T).reshape(N, Ncls, H, Wo)
        out = jnp.einsum("yh,nchx->ncyx", ry, out)
    return out


def _reference_forward(x, w1, gamma, beta, mean, var, w2, b2, eps=1e-5):
    """Plain-JAX/XLA reference (NCHW) for correctness checks."""
    y = lax.conv_general_dilated(
        x, w1, window_strides=(1, 1), padding=((1, 1), (1, 1)),
        dimension_numbers=("NCHW", "OIHW", "NCHW"))
    s = (gamma / jnp.sqrt(var + eps)).reshape(1, -1, 1, 1)
    b = (beta - mean * gamma / jnp.sqrt(var + eps)).reshape(1, -1, 1, 1)
    y = jnp.maximum(y * s + b, 0.0)
    y = lax.conv_general_dilated(
        y, w2, window_strides=(1, 1), padding=((0, 0), (0, 0)),
        dimension_numbers=("NCHW", "OIHW", "NCHW"))
    return y + b2.reshape(1, -1, 1, 1)


def _bilinear_ref(g, size):
    """Gather-based align_corners=True bilinear reference (checking only)."""
    Ho, Wo = size
    _, _, H, W = g.shape

    def coords(n_in, n_out):
        if n_out == 1 or n_in == 1:
            return jnp.zeros((n_out,), jnp.float32)
        return jnp.arange(n_out, dtype=jnp.float32) * (n_in - 1) / (n_out - 1)

    ys, xs = coords(H, Ho), coords(W, Wo)
    y0 = jnp.floor(ys).astype(jnp.int32)
    x0 = jnp.floor(xs).astype(jnp.int32)
    y1 = jnp.minimum(y0 + 1, H - 1)
    x1 = jnp.minimum(x0 + 1, W - 1)
    wy = (ys - y0.astype(jnp.float32))[:, None]
    wx = (xs - x0.astype(jnp.float32))[None, :]
    top = g[:, :, y0, :][:, :, :, x0] * (1 - wx) + g[:, :, y0, :][:, :, :, x1] * wx
    bot = g[:, :, y1, :][:, :, :, x0] * (1 - wx) + g[:, :, y1, :][:, :, :, x1] * wx
    return top * (1 - wy) + bot * wy


if __name__ == "__main__":
    # Shapes consistent with SegmentHead(in_chan=4, mid_chan=32, n_classes=8).
    N, Cin, H, W = 2, 4, 16, 16
    Cmid, Ncls = 32, 8

    key = jax.random.PRNGKey(0)
    k = jax.random.split(key, 8)
    x = jax.random.normal(k[0], (N, Cin, H, W), jnp.float32)
    w1 = jax.random.normal(k[1], (Cmid, Cin, 3, 3), jnp.float32) * 0.1
    bn_gamma = 1.0 + 0.1 * jax.random.normal(k[2], (Cmid,), jnp.float32)
    bn_beta = 0.1 * jax.random.normal(k[3], (Cmid,), jnp.float32)
    bn_mean = 0.05 * jax.random.normal(k[4], (Cmid,), jnp.float32)
    bn_var = 1.0 + 0.1 * jax.random.uniform(k[5], (Cmid,), jnp.float32)
    w2 = jax.random.normal(k[6], (Ncls, Cmid, 1, 1), jnp.float32) * 0.1
    b2 = 0.1 * jax.random.normal(k[7], (Ncls,), jnp.float32)

    ref = jax.block_until_ready(
        _reference_forward(x, w1, bn_gamma, bn_beta, bn_mean, bn_var, w2, b2))

    # Exact-path check (f32 operands), single pixel tile per image.
    out_f32 = segment_head_forward(x, w1, bn_gamma, bn_beta, bn_mean, bn_var, w2, b2,
                                   compute_dtype=jnp.float32)
    out_f32 = jax.block_until_ready(out_f32)
    assert out_f32.shape == (N, Ncls, H, W), out_f32.shape
    assert jnp.max(jnp.abs(out_f32 - ref)) < 1e-3, float(jnp.max(jnp.abs(out_f32 - ref)))

    # Multi-tile pixel grid (exercises the tiled output path + halo logic).
    out_t = segment_head_forward(x, w1, bn_gamma, bn_beta, bn_mean, bn_var, w2, b2,
                                 compute_dtype=jnp.float32, tile_pixels=128)
    out_t = jax.block_until_ready(out_t)
    assert jnp.max(jnp.abs(out_t - ref)) < 1e-3, float(jnp.max(jnp.abs(out_t - ref)))

    # Default path: bf16 matmul operands on all generations, f32 accumulation.
    out_bf16 = jax.block_until_ready(
        segment_head_forward(x, w1, bn_gamma, bn_beta, bn_mean, bn_var, w2, b2))
    assert jnp.max(jnp.abs(out_bf16 - ref)) < 5e-2, \
        float(jnp.max(jnp.abs(out_bf16 - ref)))

    # Bilinear upsample path (matmul-based, align_corners=True), f32 for tight parity.
    out_up = segment_head_forward(x, w1, bn_gamma, bn_beta, bn_mean, bn_var, w2, b2,
                                  size=(32, 32), compute_dtype=jnp.float32)
    out_up = jax.block_until_ready(out_up)
    ref_up = _bilinear_ref(ref, (32, 32))
    assert out_up.shape == (N, Ncls, 32, 32), out_up.shape
    assert jnp.max(jnp.abs(out_up - ref_up)) < 1e-3, \
        float(jnp.max(jnp.abs(out_up - ref_up)))

    print("KERNEL_OK")
</pallas_src>

<mosaic_0001>
module attributes {stable_mosaic.version = 11 : i64} {
  func.func @_seghead_kernel(%arg0: i32, %arg1: i32, %arg2: memref<1x4x512xf32, #tpu.memory_space<vmem>>, %arg3: memref<9x32x4xf32, #tpu.memory_space<vmem>>, %arg4: memref<32x1xf32, #tpu.memory_space<vmem>>, %arg5: memref<8x32xf32, #tpu.memory_space<vmem>>, %arg6: memref<8x1xf32, #tpu.memory_space<vmem>>, %arg7: memref<1x8x384xf32, #tpu.memory_space<vmem>>) attributes {dimension_semantics = [#tpu.dimension_semantics<parallel>, #tpu.dimension_semantics<parallel>], iteration_bounds = array<i64: 2, 1>, scalar_prefetch = 0 : i64, scratch_operands = 0 : i64, tpu.core_type = #tpu.core_type<tc>, window_params = [{transform_indices = @transform_0, window_bounds = array<i64: 1, 4, 512>}, {pipeline_mode = #tpu.pipeline_mode<synchronous>, transform_indices = @transform_1, window_bounds = array<i64: 9, 32, 4>}, {pipeline_mode = #tpu.pipeline_mode<synchronous>, transform_indices = @transform_2, window_bounds = array<i64: 32, 1>}, {pipeline_mode = #tpu.pipeline_mode<synchronous>, transform_indices = @transform_3, window_bounds = array<i64: 8, 32>}, {pipeline_mode = #tpu.pipeline_mode<synchronous>, transform_indices = @transform_4, window_bounds = array<i64: 8, 1>}, {transform_indices = @transform_5, window_bounds = array<i64: 1, 8, 384>}]} {
    %c384_i32 = arith.constant 384 : i32
    %0 = arith.muli %arg1, %c384_i32 : i32
    %1 = tpu.assume_multiple %0, 128 : i32
    %c0 = arith.constant 0 : index
    %c0_0 = arith.constant 0 : index
    %2 = arith.index_cast %1 : i32 to index
    %3 = vector.load %arg2[%c0, %c0_0, %2] : memref<1x4x512xf32, #tpu.memory_space<vmem>>, vector<1x4x512xf32>
    %4 = vector.shape_cast %3 : vector<1x4x512xf32> to vector<4x512xf32>
    %cst = arith.constant 0.000000e+00 : f32
    %5 = vector.broadcast %cst : f32 to vector<32x384xf32>
    %c0_1 = arith.constant 0 : index
    %c0_2 = arith.constant 0 : index
    %c0_3 = arith.constant 0 : index
    %6 = vector.load %arg3[%c0_1, %c0_2, %c0_3] : memref<9x32x4xf32, #tpu.memory_space<vmem>>, vector<1x32x4xf32>
    %7 = vector.shape_cast %6 : vector<1x32x4xf32> to vector<32x4xf32>
    %8 = vector.extract_strided_slice %4 {offsets = [0, 0], sizes = [4, 384], strides = [1, 1]} : vector<4x512xf32> to vector<4x384xf32>
    %cst_4 = arith.constant dense<0.000000e+00> : vector<32x384xf32>
    %9 = tpu.matmul %7, %8, %cst_4 {dimension_numbers = #tpu.dot_dimension_numbers<[1], [0], [0], [1], [0, 0, 1, 1], [], []>} : vector<32x4xf32>, vector<4x384xf32>, vector<32x384xf32> -> vector<32x384xf32>
    %10 = arith.addf %5, %9 : vector<32x384xf32>
    %c1 = arith.constant 1 : index
    %c0_5 = arith.constant 0 : index
    %c0_6 = arith.constant 0 : index
    %11 = vector.load %arg3[%c1, %c0_5, %c0_6] : memref<9x32x4xf32, #tpu.memory_space<vmem>>, vector<1x32x4xf32>
    %12 = vector.shape_cast %11 : vector<1x32x4xf32> to vector<32x4xf32>
    %13 = vector.extract_strided_slice %4 {offsets = [0, 1], sizes = [4, 384], strides = [1, 1]} : vector<4x512xf32> to vector<4x384xf32>
    %cst_7 = arith.constant dense<0.000000e+00> : vector<32x384xf32>
    %14 = tpu.matmul %12, %13, %cst_7 {dimension_numbers = #tpu.dot_dimension_numbers<[1], [0], [0], [1], [0, 0, 1, 1], [], []>} : vector<32x4xf32>, vector<4x384xf32>, vector<32x384xf32> -> vector<32x384xf32>
    %15 = arith.addf %10, %14 : vector<32x384xf32>
    %c2 = arith.constant 2 : index
    %c0_8 = arith.constant 0 : index
    %c0_9 = arith.constant 0 : index
    %16 = vector.load %arg3[%c2, %c0_8, %c0_9] : memref<9x32x4xf32, #tpu.memory_space<vmem>>, vector<1x32x4xf32>
    %17 = vector.shape_cast %16 : vector<1x32x4xf32> to vector<32x4xf32>
    %18 = vector.extract_strided_slice %4 {offsets = [0, 2], sizes = [4, 384], strides = [1, 1]} : vector<4x512xf32> to vector<4x384xf32>
    %cst_10 = arith.constant dense<0.000000e+00> : vector<32x384xf32>
    %19 = tpu.matmul %17, %18, %cst_10 {dimension_numbers = #tpu.dot_dimension_numbers<[1], [0], [0], [1], [0, 0, 1, 1], [], []>} : vector<32x4xf32>, vector<4x384xf32>, vector<32x384xf32> -> vector<32x384xf32>
    %20 = arith.addf %15, %19 : vector<32x384xf32>
    %c3 = arith.constant 3 : index
    %c0_11 = arith.constant 0 : index
    %c0_12 = arith.constant 0 : index
    %21 = vector.load %arg3[%c3, %c0_11, %c0_12] : memref<9x32x4xf32, #tpu.memory_space<vmem>>, vector<1x32x4xf32>
    %22 = vector.shape_cast %21 : vector<1x32x4xf32> to vector<32x4xf32>
    %23 = vector.extract_strided_slice %4 {offsets = [0, 18], sizes = [4, 384], strides = [1, 1]} : vector<4x512xf32> to vector<4x384xf32>
    %cst_13 = arith.constant dense<0.000000e+00> : vector<32x384xf32>
    %24 = tpu.matmul %22, %23, %cst_13 {dimension_numbers = #tpu.dot_dimension_numbers<[1], [0], [0], [1], [0, 0, 1, 1], [], []>} : vector<32x4xf32>, vector<4x384xf32>, vector<32x384xf32> -> vector<32x384xf32>
    %25 = arith.addf %20, %24 : vector<32x384xf32>
    %c4 = arith.constant 4 : index
    %c0_14 = arith.constant 0 : index
    %c0_15 = arith.constant 0 : index
    %26 = vector.load %arg3[%c4, %c0_14, %c0_15] : memref<9x32x4xf32, #tpu.memory_space<vmem>>, vector<1x32x4xf32>
    %27 = vector.shape_cast %26 : vector<1x32x4xf32> to vector<32x4xf32>
    %28 = vector.extract_strided_slice %4 {offsets = [0, 19], sizes = [4, 384], strides = [1, 1]} : vector<4x512xf32> to vector<4x384xf32>
    %cst_16 = arith.constant dense<0.000000e+00> : vector<32x384xf32>
    %29 = tpu.matmul %27, %28, %cst_16 {dimension_numbers = #tpu.dot_dimension_numbers<[1], [0], [0], [1], [0, 0, 1, 1], [], []>} : vector<32x4xf32>, vector<4x384xf32>, vector<32x384xf32> -> vector<32x384xf32>
    %30 = arith.addf %25, %29 : vector<32x384xf32>
    %c5 = arith.constant 5 : index
    %c0_17 = arith.constant 0 : index
    %c0_18 = arith.constant 0 : index
    %31 = vector.load %arg3[%c5, %c0_17, %c0_18] : memref<9x32x4xf32, #tpu.memory_space<vmem>>, vector<1x32x4xf32>
    %32 = vector.shape_cast %31 : vector<1x32x4xf32> to vector<32x4xf32>
    %33 = vector.extract_strided_slice %4 {offsets = [0, 20], sizes = [4, 384], strides = [1, 1]} : vector<4x512xf32> to vector<4x384xf32>
    %cst_19 = arith.constant dense<0.000000e+00> : vector<32x384xf32>
    %34 = tpu.matmul %32, %33, %cst_19 {dimension_numbers = #tpu.dot_dimension_numbers<[1], [0], [0], [1], [0, 0, 1, 1], [], []>} : vector<32x4xf32>, vector<4x384xf32>, vector<32x384xf32> -> vector<32x384xf32>
    %35 = arith.addf %30, %34 : vector<32x384xf32>
    %c6 = arith.constant 6 : index
    %c0_20 = arith.constant 0 : index
    %c0_21 = arith.constant 0 : index
    %36 = vector.load %arg3[%c6, %c0_20, %c0_21] : memref<9x32x4xf32, #tpu.memory_space<vmem>>, vector<1x32x4xf32>
    %37 = vector.shape_cast %36 : vector<1x32x4xf32> to vector<32x4xf32>
    %38 = vector.extract_strided_slice %4 {offsets = [0, 36], sizes = [4, 384], strides = [1, 1]} : vector<4x512xf32> to vector<4x384xf32>
    %cst_22 = arith.constant dense<0.000000e+00> : vector<32x384xf32>
    %39 = tpu.matmul %37, %38, %cst_22 {dimension_numbers = #tpu.dot_dimension_numbers<[1], [0], [0], [1], [0, 0, 1, 1], [], []>} : vector<32x4xf32>, vector<4x384xf32>, vector<32x384xf32> -> vector<32x384xf32>
    %40 = arith.addf %35, %39 : vector<32x384xf32>
    %c7 = arith.constant 7 : index
    %c0_23 = arith.constant 0 : index
    %c0_24 = arith.constant 0 : index
    %41 = vector.load %arg3[%c7, %c0_23, %c0_24] : memref<9x32x4xf32, #tpu.memory_space<vmem>>, vector<1x32x4xf32>
    %42 = vector.shape_cast %41 : vector<1x32x4xf32> to vector<32x4xf32>
    %43 = vector.extract_strided_slice %4 {offsets = [0, 37], sizes = [4, 384], strides = [1, 1]} : vector<4x512xf32> to vector<4x384xf32>
    %cst_25 = arith.constant dense<0.000000e+00> : vector<32x384xf32>
    %44 = tpu.matmul %42, %43, %cst_25 {dimension_numbers = #tpu.dot_dimension_numbers<[1], [0], [0], [1], [0, 0, 1, 1], [], []>} : vector<32x4xf32>, vector<4x384xf32>, vector<32x384xf32> -> vector<32x384xf32>
    %45 = arith.addf %40, %44 : vector<32x384xf32>
    %c8 = arith.constant 8 : index
    %c0_26 = arith.constant 0 : index
    %c0_27 = arith.constant 0 : index
    %46 = vector.load %arg3[%c8, %c0_26, %c0_27] : memref<9x32x4xf32, #tpu.memory_space<vmem>>, vector<1x32x4xf32>
    %47 = vector.shape_cast %46 : vector<1x32x4xf32> to vector<32x4xf32>
    %48 = vector.extract_strided_slice %4 {offsets = [0, 38], sizes = [4, 384], strides = [1, 1]} : vector<4x512xf32> to vector<4x384xf32>
    %cst_28 = arith.constant dense<0.000000e+00> : vector<32x384xf32>
    %49 = tpu.matmul %47, %48, %cst_28 {dimension_numbers = #tpu.dot_dimension_numbers<[1], [0], [0], [1], [0, 0, 1, 1], [], []>} : vector<32x4xf32>, vector<4x384xf32>, vector<32x384xf32> -> vector<32x384xf32>
    %50 = arith.addf %45, %49 : vector<32x384xf32>
    %c0_29 = arith.constant 0 : index
    %c0_30 = arith.constant 0 : index
    %51 = vector.load %arg4[%c0_29, %c0_30] : memref<32x1xf32, #tpu.memory_space<vmem>>, vector<32x1xf32>
    %52 = vector.broadcast %51 : vector<32x1xf32> to vector<32x384xf32>
    %53 = arith.addf %50, %52 : vector<32x384xf32>
    %cst_31 = arith.constant 0.000000e+00 : f32
    %54 = vector.broadcast %cst_31 : f32 to vector<32x384xf32>
    %55 = arith.maximumf %53, %54 : vector<32x384xf32>
    %c0_32 = arith.constant 0 : index
    %c0_33 = arith.constant 0 : index
    %56 = vector.load %arg5[%c0_32, %c0_33] : memref<8x32xf32, #tpu.memory_space<vmem>>, vector<8x32xf32>
    %cst_34 = arith.constant dense<0.000000e+00> : vector<8x384xf32>
    %57 = tpu.matmul %56, %55, %cst_34 {dimension_numbers = #tpu.dot_dimension_numbers<[1], [0], [0], [1], [0, 0, 1, 1], [], []>} : vector<8x32xf32>, vector<32x384xf32>, vector<8x384xf32> -> vector<8x384xf32>
    %c0_35 = arith.constant 0 : index
    %c0_36 = arith.constant 0 : index
    %58 = vector.load %arg6[%c0_35, %c0_36] : memref<8x1xf32, #tpu.memory_space<vmem>>, vector<8x1xf32>
    %59 = vector.broadcast %58 : vector<8x1xf32> to vector<8x384xf32>
    %60 = arith.addf %57, %59 : vector<8x384xf32>
    %c0_37 = arith.constant 0 : index
    %c0_38 = arith.constant 0 : index
    %c0_39 = arith.constant 0 : index
    %61 = vector.load %arg7[%c0_37, %c0_38, %c0_39] : memref<1x8x384xf32, #tpu.memory_space<vmem>>, vector<1x8x384xf32>
    %62 = vector.shape_cast %61 : vector<1x8x384xf32> to vector<8x384xf32>
    %63 = vector.shape_cast %60 : vector<8x384xf32> to vector<1x8x384xf32>
    tpu.vector_store %arg7[%c0_37, %c0_38, %c0_39], %63 {strides = array<i32>} : memref<1x8x384xf32, #tpu.memory_space<vmem>>, vector<1x8x384xf32>,
    return
  }
  func.func @transform_0(%arg0: i32, %arg1: i32) -> (i32, i32, i32) {
    %c0_i32 = arith.constant 0 : i32
    %c0_i32_0 = arith.constant 0 : i32
    %c0_i32_1 = arith.constant 0 : i32
    return %arg0, %c0_i32, %c0_i32_0 : i32, i32, i32
  }
  func.func @transform_1(%arg0: i32, %arg1: i32) -> (i32, i32, i32) {
    %c0_i32 = arith.constant 0 : i32
    %c0_i32_0 = arith.constant 0 : i32
    %c0_i32_1 = arith.constant 0 : i32
    %c0_i32_2 = arith.constant 0 : i32
    return %c0_i32, %c0_i32_0, %c0_i32_1 : i32, i32, i32
  }
  func.func @transform_2(%arg0: i32, %arg1: i32) -> (i32, i32) {
    %c0_i32 = arith.constant 0 : i32
    %c0_i32_0 = arith.constant 0 : i32
    %c0_i32_1 = arith.constant 0 : i32
    return %c0_i32, %c0_i32_0 : i32, i32
  }
  func.func @transform_3(%arg0: i32, %arg1: i32) -> (i32, i32) {
    %c0_i32 = arith.constant 0 : i32
    %c0_i32_0 = arith.constant 0 : i32
    %c0_i32_1 = arith.constant 0 : i32
    return %c0_i32, %c0_i32_0 : i32, i32
  }
  func.func @transform_4(%arg0: i32, %arg1: i32) -> (i32, i32) {
    %c0_i32 = arith.constant 0 : i32
    %c0_i32_0 = arith.constant 0 : i32
    %c0_i32_1 = arith.constant 0 : i32
    return %c0_i32, %c0_i32_0 : i32, i32
  }
  func.func @transform_5(%arg0: i32, %arg1: i32) -> (i32, i32, i32) {
    %c0_i32 = arith.constant 0 : i32
    %c0_i32_0 = arith.constant 0 : i32
    return %arg0, %c0_i32, %arg1 : i32, i32, i32
  }
}

</mosaic_0001>

<llo_original>
// kernel: segment_head_forward.1
$region0: #{segment_head_forward.1}
  #allocation0 [shape = 'u32[]', space=smem, size = 0x4, offset = 0x4, fixed_abs, tag = 'smem constant byte address 0x4 - core index']
  #allocation1 [shape = 'u32[72,128]{1,0:T(1,128)}', space=vmem, size = 0x9000, scoped, tag = 'internal scratch']
  %s0 = inlined_call_operand.vmem [shape: f32[2,4,512], index: 0, kind: input, shape index: {}]
  %s1 = inlined_call_operand.vmem [shape: f32[9,32,4], index: 1, kind: input, shape index: {}]
  %s2 = inlined_call_operand.vmem [shape: f32[32,1], index: 2, kind: input, shape index: {}]
  %s3 = inlined_call_operand.vmem [shape: f32[8,32], index: 3, kind: input, shape index: {}]
  %s4 = inlined_call_operand.vmem [shape: f32[8,1], index: 4, kind: input, shape index: {}]
  %s5 = inlined_call_operand.vmem [shape: f32[2,8,384], index: 5, kind: output, shape index: {}]
  %s6 = sld [smem:[#allocation0]]
  $region53: #{segment_head_forward.1} parent=0
    _
  %s8 = ssub.s32 1, %s6
  %s9 = scalar_select 0, %s8, %s6
  loop: start=0, step=1, limit=4
  $region2: #{segment_head_forward.1} parent=0 // loop_pre_header
    _
  $region3: #{segment_head_forward.1} parent=0 // loop_header
    %s11 = sphi 0, %s15
    %p12 = scmp.ge.s32.totalorder %s11, 4
    %s18 = sphi 0, %s30
    %s19 = sphi 0, %s26
    %s20 = sphi 0, %s18
    %s21 = sphi 0, %s19
    %s22 = sphi 0, %s20
    %s23 = sphi 0, %s21
    %s33 = sphi 0, %s35
    %s36 = sphi 0, %s33
    %s37 = sphi 0, %s36
    %s53 = sphi 0, %s37
    %s57 = sphi 0, %s57
    %s59 = sphi 0, %s57
    %s60 = sphi 0, %s59
    %s74 = sphi 0, %s60
    %s78 = sphi 0, %s78
    %s80 = sphi 0, %s78
    %s81 = sphi 0, %s80
    %s95 = sphi 0, %s81
    %s99 = sphi 0, %s99
    %s101 = sphi 0, %s99
    %s102 = sphi 0, %s101
    %s116 = sphi 0, %s102
    %s120 = sphi 0, %s120
    %s122 = sphi 0, %s120
    %s123 = sphi 0, %s122
    %s137 = sphi 0, %s123
    %s145 = sphi 0, %s147
    %s148 = sphi 0, %s145
    %s149 = sphi 0, %s148
    %s165 = sphi 0, %s149
  $region4: #{segment_head_forward.1} parent=0 // loop_header_branch
    %14 = sbr.rel (%p12) target = $region8
  $region5: #{segment_head_forward.1} parent=0 // loop_body
    %s16 = ssub.s32 %s11, 1
    %s17 = ssub.s32 %s11, 2
    %s24 = sadd.s32 1, %s19
    %p25 = scmp.ge.s32.totalorder %s24, 1
    %s26 = scalar_select %p25, 0, %s24
    %s27 = sadd.s32 1, %s18
    %s28 = scalar_select %p25, %s27, %s18
    %p29 = scmp.ge.s32.totalorder %s28, 2
    %s30 = scalar_select %p29, 0, %s28
    %s31 = ssub.s32 %s18, %s30
    %p32 = scmp.eq.s32.totalorder %s31, 0
    %s34 = sadd.s32 %s33, 1
    %s35 = scalar_select %p32, %s33, %s34
    %p38 = pneg %p32
    %p39 = scmp.eq.s32.totalorder %s11, 1
    %p40 = por %p38, %p39
    %p41 = scmp.ne.s32.totalorder %s33, %s36
    %p42 = scmp.eq.s32.totalorder %s11, 0
    %p43 = por %p41, %p42
    %p44 = scmp.ne.s32.totalorder %s33, %s36
    %p45 = scmp.eq.s32.totalorder %s16, 1
    %p46 = por %p44, %p45
    %p47 = scmp.ne.s32.totalorder %s36, %s37
    %p48 = scmp.eq.s32.totalorder %s16, 0
    %p49 = por %p47, %p48
    %p50 = scmp.ne.s32.totalorder %s36, %s37
    %p51 = scmp.eq.s32.totalorder %s17, 1
    %p52 = por %p50, %p51
    %p54 = scmp.ne.s32.totalorder %s37, %s53
    %p55 = scmp.eq.s32.totalorder %s17, 0
    %p56 = por %p54, %p55
    %s58 = sadd.s32 %s57, 1
    %p61 = scmp.eq.s32.totalorder %s11, 1
    %p62 = scmp.ne.s32.totalorder %s57, %s59
    %p63 = scmp.eq.s32.totalorder %s11, 0
    %p64 = por %p62, %p63
    %p65 = scmp.ne.s32.totalorder %s57, %s59
    %p66 = scmp.eq.s32.totalorder %s16, 1
    %p67 = por %p65, %p66
    %p68 = scmp.ne.s32.totalorder %s59, %s60
    %p69 = scmp.eq.s32.totalorder %s16, 0
    %p70 = por %p68, %p69
    %p71 = scmp.ne.s32.totalorder %s59, %s60
    %p72 = scmp.eq.s32.totalorder %s17, 1
    %p73 = por %p71, %p72
    %p75 = scmp.ne.s32.totalorder %s60, %s74
    %p76 = scmp.eq.s32.totalorder %s17, 0
    %p77 = por %p75, %p76
    %s79 = sadd.s32 %s78, 1
    %p82 = scmp.eq.s32.totalorder %s11, 1
    %p83 = scmp.ne.s32.totalorder %s78, %s80
    %p84 = scmp.eq.s32.totalorder %s11, 0
    %p85 = por %p83, %p84
    %p86 = scmp.ne.s32.totalorder %s78, %s80
    %p87 = scmp.eq.s32.totalorder %s16, 1
    %p88 = por %p86, %p87
    %p89 = scmp.ne.s32.totalorder %s80, %s81
    %p90 = scmp.eq.s32.totalorder %s16, 0
    %p91 = por %p89, %p90
    %p92 = scmp.ne.s32.totalorder %s80, %s81
    %p93 = scmp.eq.s32.totalorder %s17, 1
    %p94 = por %p92, %p93
    %p96 = scmp.ne.s32.totalorder %s81, %s95
    %p97 = scmp.eq.s32.totalorder %s17, 0
    %p98 = por %p96, %p97
    %s100 = sadd.s32 %s99, 1
    %p103 = scmp.eq.s32.totalorder %s11, 1
    %p104 = scmp.ne.s32.totalorder %s99, %s101
    %p105 = scmp.eq.s32.totalorder %s11, 0
    %p106 = por %p104, %p105
    %p107 = scmp.ne.s32.totalorder %s99, %s101
    %p108 = scmp.eq.s32.totalorder %s16, 1
    %p109 = por %p107, %p108
    %p110 = scmp.ne.s32.totalorder %s101, %s102
    %p111 = scmp.eq.s32.totalorder %s16, 0
    %p112 = por %p110, %p111
    %p113 = scmp.ne.s32.totalorder %s101, %s102
    %p114 = scmp.eq.s32.totalorder %s17, 1
    %p115 = por %p113, %p114
    %p117 = scmp.ne.s32.totalorder %s102, %s116
    %p118 = scmp.eq.s32.totalorder %s17, 0
    %p119 = por %p117, %p118
    %s121 = sadd.s32 %s120, 1
    %p124 = scmp.eq.s32.totalorder %s11, 1
    %p125 = scmp.ne.s32.totalorder %s120, %s122
    %p126 = scmp.eq.s32.totalorder %s11, 0
    %p127 = por %p125, %p126
    %p128 = scmp.ne.s32.totalorder %s120, %s122
    %p129 = scmp.eq.s32.totalorder %s16, 1
    %p130 = por %p128, %p129
    %p131 = scmp.ne.s32.totalorder %s122, %s123
    %p132 = scmp.eq.s32.totalorder %s16, 0
    %p133 = por %p131, %p132
    %p134 = scmp.ne.s32.totalorder %s122, %s123
    %p135 = scmp.eq.s32.totalorder %s17, 1
    %p136 = por %p134, %p135
    %p138 = scmp.ne.s32.totalorder %s123, %s137
    %p139 = scmp.eq.s32.totalorder %s17, 0
    %p140 = por %p138, %p139
    %s141 = ssub.s32 %s18, %s30
    %s142 = ssub.s32 %s19, %s26
    %s143 = sor.u32 %s141, %s142
    %p144 = scmp.eq.s32.totalorder %s143, 0
    %s146 = sadd.s32 %s145, 1
    %s147 = scalar_select %p144, %s145, %s146
    %p150 = pneg %p144
    %p151 = scmp.eq.s32.totalorder %s11, 1
    %p152 = por %p150, %p151
    %p153 = scmp.ne.s32.totalorder %s145, %s148
    %p154 = scmp.eq.s32.totalorder %s11, 0
    %p155 = por %p153, %p154
    %p156 = scmp.ne.s32.totalorder %s145, %s148
    %p157 = scmp.eq.s32.totalorder %s16, 1
    %p158 = por %p156, %p157
    %p159 = scmp.ne.s32.totalorder %s148, %s149
    %p160 = scmp.eq.s32.totalorder %s16, 0
    %p161 = por %p159, %p160
    %p162 = scmp.ne.s32.totalorder %s148, %s149
    %p163 = scmp.eq.s32.totalorder %s17, 1
    %p164 = por %p162, %p163
    %p166 = scmp.ne.s32.totalorder %s149, %s165
    %p167 = scmp.eq.s32.totalorder %s17, 0
    %p168 = por %p166, %p167
    %p169 = scmp.le.s32.totalorder 1, %s11
    %p170 = scmp.lt.s32.totalorder %s11, 3
    %p171 = pnand %p169, %p170
    %p172 = pneg %p171
    // Predicated region
    $region9: #{segment_head_forward.1} parent=5 // pred_check
      _
    $region10: #{segment_head_forward.1} parent=5 // pred_check_branch
      %174 = sbr.rel (%p171) target = $region12
    $region11: #{segment_head_forward.1} parent=5 // pred_region
      %s175 = ssub.s32 %s11, 1
      // Predicated region
      $region13: #{segment_head_forward.1} parent=11 // pred_check
        %p176 = pneg %p70
      $region14: #{segment_head_forward.1} parent=11 // pred_check_branch
        %178 = sbr.rel (%p176) target = $region16
      $region15: #{segment_head_forward.1} parent=11 // pred_region
        _
      $region16: #{segment_head_forward.1} parent=11 // pred_fallthru
        _
      // Predicated region
      $region17: #{segment_head_forward.1} parent=11 // pred_check
        %p179 = pneg %p91
      $region18: #{segment_head_forward.1} parent=11 // pred_check_branch
        %181 = sbr.rel (%p179) target = $region20
      $region19: #{segment_head_forward.1} parent=11 // pred_region
        _
      $region20: #{segment_head_forward.1} parent=11 // pred_fallthru
        _
      // Predicated region
      $region21: #{segment_head_forward.1} parent=11 // pred_check
        %p182 = pneg %p112
      $region22: #{segment_head_forward.1} parent=11 // pred_check_branch
        %184 = sbr.rel (%p182) target = $region24
      $region23: #{segment_head_forward.1} parent=11 // pred_region
        _
      $region24: #{segment_head_forward.1} parent=11 // pred_fallthru
        _
      // Predicated region
      $region25: #{segment_head_forward.1} parent=11 // pred_check
        %p185 = pneg %p133
      $region26: #{segment_head_forward.1} parent=11 // pred_check_branch
        %187 = sbr.rel (%p185) target = $region28
      $region27: #{segment_head_forward.1} parent=11 // pred_region
        _
      $region28: #{segment_head_forward.1} parent=11 // pred_fallthru
        _
    $region12: #{segment_head_forward.1} parent=5 // pred_fallthru
      _
    %p188 = scmp.lt.s32.totalorder %s11, 2
    // Predicated region
    $region29: #{segment_head_forward.1} parent=5 // pred_check
      %p189 = pneg %p188
    $region30: #{segment_head_forward.1} parent=5 // pred_check_branch
      %191 = sbr.rel (%p189) target = $region32
    $region31: #{segment_head_forward.1} parent=5 // pred_region
      // Predicated region
      $region33: #{segment_head_forward.1} parent=31 // pred_check
        %p192 = pneg %p43
      $region34: #{segment_head_forward.1} parent=31 // pred_check_branch
        %194 = sbr.rel (%p192) target = $region36
      $region35: #{segment_head_forward.1} parent=31 // pred_region
        %p195 = scmp.lt.s32.totalorder %s18, 1
        %s196 = scalar_select %p195, %s18, 1
        %s197 = smul.addr %s196, 4
        %s198 = smul.addr %s197, 4
        %s199 = scalar_lea.vmem %s0, %s198
      $region36: #{segment_head_forward.1} parent=31 // pred_fallthru
        _
    $region32: #{segment_head_forward.1} parent=5 // pred_fallthru
      _
    %p200 = scmp.le.s32.totalorder 1, %s11
    %p201 = scmp.lt.s32.totalorder %s11, 3
    %p202 = pnand %p200, %p201
    %p203 = pneg %p202
    // Predicated region
    $region37: #{segment_head_forward.1} parent=5 // pred_check
      _
    $region38: #{segment_head_forward.1} parent=5 // pred_check_branch
      %205 = sbr.rel (%p202) target = $region40
    $region39: #{segment_head_forward.1} parent=5 // pred_region
      %s206 = ssub.s32 %s11, 1
      %p207 = scmp.lt.s32.totalorder %s20, 1
      %s208 = scalar_select %p207, %s20, 1
      %s209 = smul.addr %s208, 4
      %s210 = smul.addr %s209, 4
      %s211 = scalar_lea.vmem %s0, %s210
      %p212 = pneg %p49
      %p213 = pneg %p46
      %p214 = pneg %p70
      %p215 = pneg %p67
      %p216 = pneg %p91
      %p217 = pneg %p88
      %p218 = pneg %p112
      %p219 = pneg %p109
      %p220 = pneg %p133
      %p221 = pneg %p130
      %p222 = pneg %p161
      %p223 = pneg %p158
      %s224 = smul.u32 3, %s21
      %p225 = scmp.lt.s32.totalorder %s20, 1
      %s226 = scalar_select %p225, %s20, 1
      %p227 = scmp.lt.s32.totalorder %s224, 2
      %s228 = scalar_select %p227, %s224, 2
      %s229 = smul.addr %s226, 3
      %s230 = sadd.s32 %s228, %s229
      %s231 = smul.addr %s230, 8
      %s232 = scalar_lea.vmem %s5, %s231
      %p233 = scmp.lt.s32.totalorder %s20, 1
      %s234 = scalar_select %p233, %s20, 1
      %s235 = smul.addr %s234, 4
      %s236 = smul.addr %s235, 4
      %s237 = scalar_lea.vmem %s0, %s236
      %s238 = smul.u32 3, %s21
      %p239 = scmp.lt.s32.totalorder %s20, 1
      %s240 = scalar_select %p239, %s20, 1
      %p241 = scmp.lt.s32.totalorder %s238, 2
      %s242 = scalar_select %p241, %s238, 2
      %s243 = smul.addr %s240, 3
      %s244 = sadd.s32 %s242, %s243
      %s245 = smul.addr %s244, 8
      %s246 = scalar_lea.vmem %s5, %s245
      %s247 = smul.u32 3, %s21
      %s248 = smul.u32 %s21, 384
      %s249 = sshra.s32 %s248, 7
      %s250 = sand.u32 %s248, 127
      %s251 = smul.addr %s249, 4
      %s252 = scalar_lea.vmem %s237, %s251
      %v253 = vld [vmem:[%s252] sm:$0xff]
      %v254 = vld [vmem:[%s252 + $0x8] sm:$0xff]
      %v255 = vld [vmem:[%s1] sm:$0xff]
      %v256 = vld [vmem:[%s1 + $0x8] sm:$0xff]
      %v257 = vld [vmem:[%s1 + $0x10] sm:$0xff]
      %v258 = vld [vmem:[%s1 + $0x18] sm:$0xff]
      %s259 = scalar_lea.vmem %s1, 32
      %v260 = vld [vmem:[%s259] sm:$0xff]
      %v261 = vld [vmem:[%s259 + $0x8] sm:$0xff]
      %v262 = vld [vmem:[%s259 + $0x10] sm:$0xff]
      %v263 = vld [vmem:[%s259 + $0x18] sm:$0xff]
      %266 = vst [vmem:[#allocation1] ss:$2 sm:$0xff] %v253
      %s267 = scalar_lea.vmem [#allocation1], 16
      %268 = vst [vmem:[%s267] ss:$2 sm:$0xff] %v254
      %v269 = vld.sshfl [vmem:[#allocation1] sm:$0xff pattern:$0x75316420]
      %v270 = vld.sshfl [vmem:[#allocation1 + $0x8] sm:$0xff pattern:$0x75316420]
      %v271 = vld.sshfl [vmem:[#allocation1 + $0x10] sm:$0xff pattern:$0x75316420]
      %v272 = vld.sshfl [vmem:[#allocation1 + $0x18] sm:$0xff pattern:$0x75316420]
      %273 = vrot.lane.b32.xlu0 %v269, 127
      %v274 = vpop.permute.xlu0 %273
      %275 = vrot.lane.b32.xlu0 %v270, 127
      %v276 = vpop.permute.xlu0 %275
      %277 = vrot.lane.b32.xlu0 %v271, 127
      %v278 = vpop.permute.xlu0 %277
      %279 = vrot.lane.b32.xlu0 %v272, 127
      %v280 = vpop.permute.xlu0 %279
      %vm281 = vcmask 1039360
      %v282 = vsel %vm281, %v274, %v276
      %v283 = vsel %vm281, %v276, %v278
      %v284 = vsel %vm281, %v278, %v280
      %vm285 = vcmask 31744
      %v287 = vsel %vm285, %v260, 0
      %v290 = vsel %vm285, %v261, 0
      %v293 = vsel %vm285, %v262, 0
      %v296 = vsel %vm285, %v263, 0
      %vm298 = vcmask 1043456
      %v299 = vsel %vm298, %v282, 0
      %v301 = vsel %vm298, %v283, 0
      %v303 = vsel %vm298, %v284, 0
      %305 = vmatpush.msra.mxu0 0.0
      %306 = vmatpush.msra.mxu0 0.0
      %307 = vmatpush.msra.mxu0 0.0
      %308 = vmatpush.msra.mxu0 0.0
      %309 = vmatpush.msra.mxu0 0.0
      %310 = vmatpush.msra.mxu0 0.0
      %311 = vmatpush.msra.mxu0 0.0
      %312 = vmatpush.msra.mxu0 0.0
      %313 = vmatpush.msra.mxu0 0.0
      %314 = vmatpush.msra.mxu0 0.0
      %315 = vmatpush.msra.mxu0 0.0
      %316 = vmatpush.msra.mxu0 0.0
      %317 = vmatpush.msra.mxu0 0.0
      %318 = vmatpush.msra.mxu0 0.0
      %319 = vmatpush.msra.mxu0 0.0
      %320 = vmatpush.msra.mxu0 %v299
      %321 = vmatmul.f32.gmra.mxu0 %v287
      %v322 = vpop.f32.mrf.mxu0
      %v323 = vadd.f32 0.0, %v322
      %324 = vmatmul.f32.gmra.mxu0 %v290
      %v325 = vpop.f32.mrf.mxu0
      %v326 = vadd.f32 0.0, %v325
      %327 = vmatmul.f32.gmra.mxu0 %v293
      %v328 = vpop.f32.mrf.mxu0
      %v329 = vadd.f32 0.0, %v328
      %330 = vmatmul.f32.gmra.mxu0 %v296
      %v331 = vpop.f32.mrf.mxu0
      %v332 = vadd.f32 0.0, %v331
      %333 = vdwg.mxu0
      %334 = vmatpush.msra.mxu0 0.0
      %335 = vmatpush.msra.mxu0 0.0
      %336 = vmatpush.msra.mxu0 0.0
      %337 = vmatpush.msra.mxu0 0.0
      %338 = vmatpush.msra.mxu0 0.0
      %339 = vmatpush.msra.mxu0 0.0
      %340 = vmatpush.msra.mxu0 0.0
      %341 = vmatpush.msra.mxu0 0.0
      %342 = vmatpush.msra.mxu0 0.0
      %343 = vmatpush.msra.mxu0 0.0
      %344 = vmatpush.msra.mxu0 0.0
      %345 = vmatpush.msra.mxu0 0.0
      %346 = vmatpush.msra.mxu0 0.0
      %347 = vmatpush.msra.mxu0 0.0
      %348 = vmatpush.msra.mxu0 0.0
      %349 = vmatpush.msra.mxu0 %v301
      %350 = vmatmul.f32.gmra.mxu0 %v287
      %v351 = vpop.f32.mrf.mxu0
      %v352 = vadd.f32 0.0, %v351
      %353 = vmatmul.f32.gmra.mxu0 %v290
      %v354 = vpop.f32.mrf.mxu0
      %v355 = vadd.f32 0.0, %v354
      %356 = vmatmul.f32.gmra.mxu0 %v293
      %v357 = vpop.f32.mrf.mxu0
      %v358 = vadd.f32 0.0, %v357
      %359 = vmatmul.f32.gmra.mxu0 %v296
      %v360 = vpop.f32.mrf.mxu0
      %v361 = vadd.f32 0.0, %v360
      %362 = vdwg.mxu0
      %363 = vmatpush.msra.mxu0 0.0
      %364 = vmatpush.msra.mxu0 0.0
      %365 = vmatpush.msra.mxu0 0.0
      %366 = vmatpush.msra.mxu0 0.0
      %367 = vmatpush.msra.mxu0 0.0
      %368 = vmatpush.msra.mxu0 0.0
      %369 = vmatpush.msra.mxu0 0.0
      %370 = vmatpush.msra.mxu0 0.0
      %371 = vmatpush.msra.mxu0 0.0
      %372 = vmatpush.msra.mxu0 0.0
      %373 = vmatpush.msra.mxu0 0.0
      %374 = vmatpush.msra.mxu0 0.0
      %375 = vmatpush.msra.mxu0 0.0
      %376 = vmatpush.msra.mxu0 0.0
      %377 = vmatpush.msra.mxu0 0.0
      %378 = vmatpush.msra.mxu0 %v303
      %379 = vmatmul.f32.gmra.mxu0 %v287
      %v380 = vpop.f32.mrf.mxu0
      %v381 = vadd.f32 0.0, %v380
      %382 = vmatmul.f32.gmra.mxu0 %v290
      %v383 = vpop.f32.mrf.mxu0
      %v384 = vadd.f32 0.0, %v383
      %385 = vmatmul.f32.gmra.mxu0 %v293
      %v386 = vpop.f32.mrf.mxu0
      %v387 = vadd.f32 0.0, %v386
      %388 = vmatmul.f32.gmra.mxu0 %v296
      %v389 = vpop.f32.mrf.mxu0
      %v390 = vadd.f32 0.0, %v389
      %391 = vdwg.mxu0
      %392 = vst [vmem:[#allocation1] ss:$2 sm:$0xff] %v253
      %s393 = scalar_lea.vmem [#allocation1], 16
      %394 = vst [vmem:[%s393] ss:$2 sm:$0xff] %v254
      %v395 = vld.sshfl [vmem:[#allocation1] sm:$0xff pattern:$0x75316420]
      %v396 = vld.sshfl [vmem:[#allocation1 + $0x8] sm:$0xff pattern:$0x75316420]
      %v397 = vld.sshfl [vmem:[#allocation1 + $0x10] sm:$0xff pattern:$0x75316420]
      %v399 = vsel %vm285, %v255, 0
      %v402 = vsel %vm285, %v256, 0
      %v405 = vsel %vm285, %v257, 0
      %v408 = vsel %vm285, %v258, 0
      %v410 = vsel %vm298, %v395, 0
      %v412 = vsel %vm298, %v396, 0
      %v414 = vsel %vm298, %v397, 0
      %416 = vmatpush.msra.mxu0 0.0
      %417 = vmatpush.msra.mxu0 0.0
      %418 = vmatpush.msra.mxu0 0.0
      %419 = vmatpush.msra.mxu0 0.0
      %420 = vmatpush.msra.mxu0 0.0
      %421 = vmatpush.msra.mxu0 0.0
      %422 = vmatpush.msra.mxu0 0.0
      %423 = vmatpush.msra.mxu0 0.0
      %424 = vmatpush.msra.mxu0 0.0
      %425 = vmatpush.msra.mxu0 0.0
      %426 = vmatpush.msra.mxu0 0.0
      %427 = vmatpush.msra.mxu0 0.0
      %428 = vmatpush.msra.mxu0 0.0
      %429 = vmatpush.msra.mxu0 0.0
      %430 = vmatpush.msra.mxu0 0.0
      %431 = vmatpush.msra.mxu0 %v410
      %432 = vmatmul.f32.gmra.mxu0 %v399
      %v433 = vpop.f32.mrf.mxu0
      %v434 = vadd.f32 %v323, %v433
      %435 = vmatmul.f32.gmra.mxu0 %v402
      %v436 = vpop.f32.mrf.mxu0
      %v437 = vadd.f32 %v326, %v436
      %438 = vmatmul.f32.gmra.mxu0 %v405
      %v439 = vpop.f32.mrf.mxu0
      %v440 = vadd.f32 %v329, %v439
      %441 = vmatmul.f32.gmra.mxu0 %v408
      %v442 = vpop.f32.mrf.mxu0
      %v443 = vadd.f32 %v332, %v442
      %444 = vdwg.mxu0
      %445 = vmatpush.msra.mxu0 0.0
      %446 = vmatpush.msra.mxu0 0.0
      %447 = vmatpush.msra.mxu0 0.0
      %448 = vmatpush.msra.mxu0 0.0
      %449 = vmatpush.msra.mxu0 0.0
      %450 = vmatpush.msra.mxu0 0.0
      %451 = vmatpush.msra.mxu0 0.0
      %452 = vmatpush.msra.mxu0 0.0
      %453 = vmatpush.msra.mxu0 0.0
      %454 = vmatpush.msra.mxu0 0.0
      %455 = vmatpush.msra.mxu0 0.0
      %456 = vmatpush.msra.mxu0 0.0
      %457 = vmatpush.msra.mxu0 0.0
      %458 = vmatpush.msra.mxu0 0.0
      %459 = vmatpush.msra.mxu0 0.0
      %460 = vmatpush.msra.mxu0 %v412
      %461 = vmatmul.f32.gmra.mxu0 %v399
      %v462 = vpop.f32.mrf.mxu0
      %v463 = vadd.f32 %v352, %v462
      %464 = vmatmul.f32.gmra.mxu0 %v402
      %v465 = vpop.f32.mrf.mxu0
      %v466 = vadd.f32 %v355, %v465
      %467 = vmatmul.f32.gmra.mxu0 %v405
      %v468 = vpop.f32.mrf.mxu0
      %v469 = vadd.f32 %v358, %v468
      %470 = vmatmul.f32.gmra.mxu0 %v408
      %v471 = vpop.f32.mrf.mxu0
      %v472 = vadd.f32 %v361, %v471
      %473 = vdwg.mxu0
      %474 = vmatpush.msra.mxu0 0.0
      %475 = vmatpush.msra.mxu0 0.0
      %476 = vmatpush.msra.mxu0 0.0
      %477 = vmatpush.msra.mxu0 0.0
      %478 = vmatpush.msra.mxu0 0.0
      %479 = vmatpush.msra.mxu0 0.0
      %480 = vmatpush.msra.mxu0 0.0
      %481 = vmatpush.msra.mxu0 0.0
      %482 = vmatpush.msra.mxu0 0.0
      %483 = vmatpush.msra.mxu0 0.0
      %484 = vmatpush.msra.mxu0 0.0
      %485 = vmatpush.msra.mxu0 0.0
      %486 = vmatpush.msra.mxu0 0.0
      %487 = vmatpush.msra.mxu0 0.0
      %488 = vmatpush.msra.mxu0 0.0
      %489 = vmatpush.msra.mxu0 %v414
      %490 = vmatmul.f32.gmra.mxu0 %v399
      %v491 = vpop.f32.mrf.mxu0
      %v492 = vadd.f32 %v381, %v491
      %493 = vmatmul.f32.gmra.mxu0 %v402
      %v494 = vpop.f32.mrf.mxu0
      %v495 = vadd.f32 %v384, %v494
      %496 = vmatmul.f32.gmra.mxu0 %v405
      %v497 = vpop.f32.mrf.mxu0
      %v498 = vadd.f32 %v387, %v497
      %499 = vmatmul.f32.gmra.mxu0 %v408
      %v500 = vpop.f32.mrf.mxu0
      %v501 = vadd.f32 %v390, %v500
      %502 = vdwg.mxu0
      %s503 = scalar_lea.vmem %s1, 64
      %v504 = vld [vmem:[%s503] sm:$0xff]
      %v505 = vld [vmem:[%s503 + $0x8] sm:$0xff]
      %v506 = vld [vmem:[%s503 + $0x10] sm:$0xff]
      %v507 = vld [vmem:[%s503 + $0x18] sm:$0xff]
      %508 = vst [vmem:[#allocation1] ss:$2 sm:$0xff] %v253
      %s509 = scalar_lea.vmem [#allocation1], 16
      %510 = vst [vmem:[%s509] ss:$2 sm:$0xff] %v254
      %v511 = vld.sshfl [vmem:[#allocation1] sm:$0xff pattern:$0x75316420]
      %v512 = vld.sshfl [vmem:[#allocation1 + $0x8] sm:$0xff pattern:$0x75316420]
      %v513 = vld.sshfl [vmem:[#allocation1 + $0x10] sm:$0xff pattern:$0x75316420]
      %v514 = vld.sshfl [vmem:[#allocation1 + $0x18] sm:$0xff pattern:$0x75316420]
      %515 = vrot.lane.b32.xlu0 %v511, 126
      %v516 = vpop.permute.xlu0 %515
      %517 = vrot.lane.b32.xlu0 %v512, 126
      %v518 = vpop.permute.xlu0 %517
      %519 = vrot.lane.b32.xlu0 %v513, 126
      %v520 = vpop.permute.xlu0 %519
      %521 = vrot.lane.b32.xlu0 %v514, 126
      %v522 = vpop.permute.xlu0 %521
      %vm523 = vcmask 1031168
      %v524 = vsel %vm523, %v516, %v518
      %v525 = vsel %vm523, %v518, %v520
      %v526 = vsel %vm523, %v520, %v522
      %v528 = vsel %vm285, %v504, 0
      %v531 = vsel %vm285, %v505, 0
      %v534 = vsel %vm285, %v506, 0
      %v537 = vsel %vm285, %v507, 0
      %v539 = vsel %vm298, %v524, 0
      %v541 = vsel %vm298, %v525, 0
      %v543 = vsel %vm298, %v526, 0
      %545 = vmatpush.msra.mxu0 0.0
      %546 = vmatpush.msra.mxu0 0.0
      %547 = vmatpush.msra.mxu0 0.0
      %548 = vmatpush.msra.mxu0 0.0
      %549 = vmatpush.msra.mxu0 0.0
      %550 = vmatpush.msra.mxu0 0.0
      %551 = vmatpush.msra.mxu0 0.0
      %552 = vmatpush.msra.mxu0 0.0
      %553 = vmatpush.msra.mxu0 0.0
      %554 = vmatpush.msra.mxu0 0.0
      %555 = vmatpush.msra.mxu0 0.0
      %556 = vmatpush.msra.mxu0 0.0
      %557 = vmatpush.msra.mxu0 0.0
      %558 = vmatpush.msra.mxu0 0.0
      %559 = vmatpush.msra.mxu0 0.0
      %560 = vmatpush.msra.mxu0 %v539
      %561 = vmatmul.f32.gmra.mxu0 %v528
      %v562 = vpop.f32.mrf.mxu0
      %v563 = vadd.f32 0.0, %v562
      %564 = vmatmul.f32.gmra.mxu0 %v531
      %v565 = vpop.f32.mrf.mxu0
      %v566 = vadd.f32 0.0, %v565
      %567 = vmatmul.f32.gmra.mxu0 %v534
      %v568 = vpop.f32.mrf.mxu0
      %v569 = vadd.f32 0.0, %v568
      %570 = vmatmul.f32.gmra.mxu0 %v537
      %v571 = vpop.f32.mrf.mxu0
      %v572 = vadd.f32 0.0, %v571
      %573 = vdwg.mxu0
      %574 = vmatpush.msra.mxu0 0.0
      %575 = vmatpush.msra.mxu0 0.0
      %576 = vmatpush.msra.mxu0 0.0
      %577 = vmatpush.msra.mxu0 0.0
      %578 = vmatpush.msra.mxu0 0.0
      %579 = vmatpush.msra.mxu0 0.0
      %580 = vmatpush.msra.mxu0 0.0
      %581 = vmatpush.msra.mxu0 0.0
      %582 = vmatpush.msra.mxu0 0.0
      %583 = vmatpush.msra.mxu0 0.0
      %584 = vmatpush.msra.mxu0 0.0
      %585 = vmatpush.msra.mxu0 0.0
      %586 = vmatpush.msra.mxu0 0.0
      %587 = vmatpush.msra.mxu0 0.0
      %588 = vmatpush.msra.mxu0 0.0
      %589 = vmatpush.msra.mxu0 %v541
      %590 = vmatmul.f32.gmra.mxu0 %v528
      %v591 = vpop.f32.mrf.mxu0
      %v592 = vadd.f32 0.0, %v591
      %593 = vmatmul.f32.gmra.mxu0 %v531
      %v594 = vpop.f32.mrf.mxu0
      %v595 = vadd.f32 0.0, %v594
      %596 = vmatmul.f32.gmra.mxu0 %v534
      %v597 = vpop.f32.mrf.mxu0
      %v598 = vadd.f32 0.0, %v597
      %599 = vmatmul.f32.gmra.mxu0 %v537
      %v600 = vpop.f32.mrf.mxu0
      %v601 = vadd.f32 0.0, %v600
      %602 = vdwg.mxu0
      %603 = vmatpush.msra.mxu0 0.0
      %604 = vmatpush.msra.mxu0 0.0
      %605 = vmatpush.msra.mxu0 0.0
      %606 = vmatpush.msra.mxu0 0.0
      %607 = vmatpush.msra.mxu0 0.0
      %608 = vmatpush.msra.mxu0 0.0
      %609 = vmatpush.msra.mxu0 0.0
      %610 = vmatpush.msra.mxu0 0.0
      %611 = vmatpush.msra.mxu0 0.0
      %612 = vmatpush.msra.mxu0 0.0
      %613 = vmatpush.msra.mxu0 0.0
      %614 = vmatpush.msra.mxu0 0.0
      %615 = vmatpush.msra.mxu0 0.0
      %616 = vmatpush.msra.mxu0 0.0
      %617 = vmatpush.msra.mxu0 0.0
      %618 = vmatpush.msra.mxu0 %v543
      %619 = vmatmul.f32.gmra.mxu0 %v528
      %v620 = vpop.f32.mrf.mxu0
      %v621 = vadd.f32 0.0, %v620
      %622 = vmatmul.f32.gmra.mxu0 %v531
      %v623 = vpop.f32.mrf.mxu0
      %v624 = vadd.f32 0.0, %v623
      %625 = vmatmul.f32.gmra.mxu0 %v534
      %v626 = vpop.f32.mrf.mxu0
      %v627 = vadd.f32 0.0, %v626
      %628 = vmatmul.f32.gmra.mxu0 %v537
      %v629 = vpop.f32.mrf.mxu0
      %v630 = vadd.f32 0.0, %v629
      %631 = vdwg.mxu0
      %v632 = vadd.f32 %v434, %v563
      %v633 = vadd.f32 %v463, %v592
      %v634 = vadd.f32 %v492, %v621
      %v635 = vadd.f32 %v437, %v566
      %v636 = vadd.f32 %v466, %v595
      %v637 = vadd.f32 %v495, %v624
      %v638 = vadd.f32 %v440, %v569
      %v639 = vadd.f32 %v469, %v598
      %v640 = vadd.f32 %v498, %v627
      %v641 = vadd.f32 %v443, %v572
      %v642 = vadd.f32 %v472, %v601
      %v643 = vadd.f32 %v501, %v630
      %s644 = scalar_lea.vmem %s1, 96
      %v645 = vld [vmem:[%s644] sm:$0xff]
      %v646 = vld [vmem:[%s644 + $0x8] sm:$0xff]
      %v647 = vld [vmem:[%s644 + $0x10] sm:$0xff]
      %v648 = vld [vmem:[%s644 + $0x18] sm:$0xff]
      %649 = vst [vmem:[#allocation1] ss:$2 sm:$0xff] %v253
      %s650 = scalar_lea.vmem [#allocation1], 16
      %651 = vst [vmem:[%s650] ss:$2 sm:$0xff] %v254
      %v652 = vld.sshfl [vmem:[#allocation1] sm:$0xff pattern:$0x75316420]
      %v653 = vld.sshfl [vmem:[#allocation1 + $0x8] sm:$0xff pattern:$0x75316420]
      %v654 = vld.sshfl [vmem:[#allocation1 + $0x10] sm:$0xff pattern:$0x75316420]
      %v655 = vld.sshfl [vmem:[#allocation1 + $0x18] sm:$0xff pattern:$0x75316420]
      %656 = vrot.lane.b32.xlu0 %v652, 110
      %v657 = vpop.permute.xlu0 %656
      %658 = vrot.lane.b32.xlu0 %v653, 110
      %v659 = vpop.permute.xlu0 %658
      %660 = vrot.lane.b32.xlu0 %v654, 110
      %v661 = vpop.permute.xlu0 %660
      %662 = vrot.lane.b32.xlu0 %v655, 110
      %v663 = vpop.permute.xlu0 %662
      %vm664 = vcmask 900096
      %v665 = vsel %vm664, %v657, %v659
      %v666 = vsel %vm664, %v659, %v661
      %v667 = vsel %vm664, %v661, %v663
      %v669 = vsel %vm285, %v645, 0
      %v672 = vsel %vm285, %v646, 0
      %v675 = vsel %vm285, %v647, 0
      %v678 = vsel %vm285, %v648, 0
      %v680 = vsel %vm298, %v665, 0
      %v682 = vsel %vm298, %v666, 0
      %v684 = vsel %vm298, %v667, 0
      %686 = vmatpush.msra.mxu0 0.0
      %687 = vmatpush.msra.mxu0 0.0
      %688 = vmatpush.msra.mxu0 0.0
      %689 = vmatpush.msra.mxu0 0.0
      %690 = vmatpush.msra.mxu0 0.0
      %691 = vmatpush.msra.mxu0 0.0
      %692 = vmatpush.msra.mxu0 0.0
      %693 = vmatpush.msra.mxu0 0.0
      %694 = vmatpush.msra.mxu0 0.0
      %695 = vmatpush.msra.mxu0 0.0
      %696 = vmatpush.msra.mxu0 0.0
      %697 = vmatpush.msra.mxu0 0.0
      %698 = vmatpush.msra.mxu0 0.0
      %699 = vmatpush.msra.mxu0 0.0
      %700 = vmatpush.msra.mxu0 0.0
      %701 = vmatpush.msra.mxu0 %v680
      %702 = vmatmul.f32.gmra.mxu0 %v669
      %v703 = vpop.f32.mrf.mxu0
      %v704 = vadd.f32 0.0, %v703
      %705 = vmatmul.f32.gmra.mxu0 %v672
      %v706 = vpop.f32.mrf.mxu0
      %v707 = vadd.f32 0.0, %v706
      %708 = vmatmul.f32.gmra.mxu0 %v675
      %v709 = vpop.f32.mrf.mxu0
      %v710 = vadd.f32 0.0, %v709
      %711 = vmatmul.f32.gmra.mxu0 %v678
      %v712 = vpop.f32.mrf.mxu0
      %v713 = vadd.f32 0.0, %v712
      %714 = vdwg.mxu0
      %715 = vmatpush.msra.mxu0 0.0
      %716 = vmatpush.msra.mxu0 0.0
      %717 = vmatpush.msra.mxu0 0.0
      %718 = vmatpush.msra.mxu0 0.0
      %719 = vmatpush.msra.mxu0 0.0
      %720 = vmatpush.msra.mxu0 0.0
      %721 = vmatpush.msra.mxu0 0.0
      %722 = vmatpush.msra.mxu0 0.0
      %723 = vmatpush.msra.mxu0 0.0
      %724 = vmatpush.msra.mxu0 0.0
      %725 = vmatpush.msra.mxu0 0.0
      %726 = vmatpush.msra.mxu0 0.0
      %727 = vmatpush.msra.mxu0 0.0
      %728 = vmatpush.msra.mxu0 0.0
      %729 = vmatpush.msra.mxu0 0.0
      %730 = vmatpush.msra.mxu0 %v682
      %731 = vmatmul.f32.gmra.mxu0 %v669
      %v732 = vpop.f32.mrf.mxu0
      %v733 = vadd.f32 0.0, %v732
      %734 = vmatmul.f32.gmra.mxu0 %v672
      %v735 = vpop.f32.mrf.mxu0
      %v736 = vadd.f32 0.0, %v735
      %737 = vmatmul.f32.gmra.mxu0 %v675
      %v738 = vpop.f32.mrf.mxu0
      %v739 = vadd.f32 0.0, %v738
      %740 = vmatmul.f32.gmra.mxu0 %v678
      %v741 = vpop.f32.mrf.mxu0
      %v742 = vadd.f32 0.0, %v741
      %743 = vdwg.mxu0
      %744 = vmatpush.msra.mxu0 0.0
      %745 = vmatpush.msra.mxu0 0.0
      %746 = vmatpush.msra.mxu0 0.0
      %747 = vmatpush.msra.mxu0 0.0
      %748 = vmatpush.msra.mxu0 0.0
      %749 = vmatpush.msra.mxu0 0.0
      %750 = vmatpush.msra.mxu0 0.0
      %751 = vmatpush.msra.mxu0 0.0
      %752 = vmatpush.msra.mxu0 0.0
      %753 = vmatpush.msra.mxu0 0.0
      %754 = vmatpush.msra.mxu0 0.0
      %755 = vmatpush.msra.mxu0 0.0
      %756 = vmatpush.msra.mxu0 0.0
      %757 = vmatpush.msra.mxu0 0.0
      %758 = vmatpush.msra.mxu0 0.0
      %759 = vmatpush.msra.mxu0 %v684
      %760 = vmatmul.f32.gmra.mxu0 %v669
      %v761 = vpop.f32.mrf.mxu0
      %v762 = vadd.f32 0.0, %v761
      %763 = vmatmul.f32.gmra.mxu0 %v672
      %v764 = vpop.f32.mrf.mxu0
      %v765 = vadd.f32 0.0, %v764
      %766 = vmatmul.f32.gmra.mxu0 %v675
      %v767 = vpop.f32.mrf.mxu0
      %v768 = vadd.f32 0.0, %v767
      %769 = vmatmul.f32.gmra.mxu0 %v678
      %v770 = vpop.f32.mrf.mxu0
      %v771 = vadd.f32 0.0, %v770
      %772 = vdwg.mxu0
      %v773 = vadd.f32 %v632, %v704
      %v774 = vadd.f32 %v633, %v733
      %v775 = vadd.f32 %v634, %v762
      %v776 = vadd.f32 %v635, %v707
      %v777 = vadd.f32 %v636, %v736
      %v778 = vadd.f32 %v637, %v765
      %v779 = vadd.f32 %v638, %v710
      %v780 = vadd.f32 %v639, %v739
      %v781 = vadd.f32 %v640, %v768
      %v782 = vadd.f32 %v641, %v713
      %v783 = vadd.f32 %v642, %v742
      %v784 = vadd.f32 %v643, %v771
      %s785 = scalar_lea.vmem %s1, 128
      %v786 = vld [vmem:[%s785] sm:$0xff]
      %v787 = vld [vmem:[%s785 + $0x8] sm:$0xff]
      %v788 = vld [vmem:[%s785 + $0x10] sm:$0xff]
      %v789 = vld [vmem:[%s785 + $0x18] sm:$0xff]
      %790 = vst [vmem:[#allocation1] ss:$2 sm:$0xff] %v253
      %s791 = scalar_lea.vmem [#allocation1], 16
      %792 = vst [vmem:[%s791] ss:$2 sm:$0xff] %v254
      %v793 = vld.sshfl [vmem:[#allocation1] sm:$0xff pattern:$0x75316420]
      %v794 = vld.sshfl [vmem:[#allocation1 + $0x8] sm:$0xff pattern:$0x75316420]
      %v795 = vld.sshfl [vmem:[#allocation1 + $0x10] sm:$0xff pattern:$0x75316420]
      %v796 = vld.sshfl [vmem:[#allocation1 + $0x18] sm:$0xff pattern:$0x75316420]
      %797 = vrot.lane.b32.xlu0 %v793, 109
      %v798 = vpop.permute.xlu0 %797
      %799 = vrot.lane.b32.xlu0 %v794, 109
      %v800 = vpop.permute.xlu0 %799
      %801 = vrot.lane.b32.xlu0 %v795, 109
      %v802 = vpop.permute.xlu0 %801
      %803 = vrot.lane.b32.xlu0 %v796, 109
      %v804 = vpop.permute.xlu0 %803
      %vm805 = vcmask 891904
      %v806 = vsel %vm805, %v798, %v800
      %v807 = vsel %vm805, %v800, %v802
      %v808 = vsel %vm805, %v802, %v804
      %v810 = vsel %vm285, %v786, 0
      %v813 = vsel %vm285, %v787, 0
      %v816 = vsel %vm285, %v788, 0
      %v819 = vsel %vm285, %v789, 0
      %v821 = vsel %vm298, %v806, 0
      %v823 = vsel %vm298, %v807, 0
      %v825 = vsel %vm298, %v808, 0
      %827 = vmatpush.msra.mxu0 0.0
      %828 = vmatpush.msra.mxu0 0.0
      %829 = vmatpush.msra.mxu0 0.0
      %830 = vmatpush.msra.mxu0 0.0
      %831 = vmatpush.msra.mxu0 0.0
      %832 = vmatpush.msra.mxu0 0.0
      %833 = vmatpush.msra.mxu0 0.0
      %834 = vmatpush.msra.mxu0 0.0
      %835 = vmatpush.msra.mxu0 0.0
      %836 = vmatpush.msra.mxu0 0.0
      %837 = vmatpush.msra.mxu0 0.0
      %838 = vmatpush.msra.mxu0 0.0
      %839 = vmatpush.msra.mxu0 0.0
      %840 = vmatpush.msra.mxu0 0.0
      %841 = vmatpush.msra.mxu0 0.0
      %842 = vmatpush.msra.mxu0 %v821
      %843 = vmatmul.f32.gmra.mxu0 %v810
      %v844 = vpop.f32.mrf.mxu0
      %v845 = vadd.f32 0.0, %v844
      %846 = vmatmul.f32.gmra.mxu0 %v813
      %v847 = vpop.f32.mrf.mxu0
      %v848 = vadd.f32 0.0, %v847
      %849 = vmatmul.f32.gmra.mxu0 %v816
      %v850 = vpop.f32.mrf.mxu0
      %v851 = vadd.f32 0.0, %v850
      %852 = vmatmul.f32.gmra.mxu0 %v819
      %v853 = vpop.f32.mrf.mxu0
      %v854 = vadd.f32 0.0, %v853
      %855 = vdwg.mxu0
      %856 = vmatpush.msra.mxu0 0.0
      %857 = vmatpush.msra.mxu0 0.0
      %858 = vmatpush.msra.mxu0 0.0
      %859 = vmatpush.msra.mxu0 0.0
      %860 = vmatpush.msra.mxu0 0.0
      %861 = vmatpush.msra.mxu0 0.0
      %862 = vmatpush.msra.mxu0 0.0
      %863 = vmatpush.msra.mxu0 0.0
      %864 = vmatpush.msra.mxu0 0.0
      %865 = vmatpush.msra.mxu0 0.0
      %866 = vmatpush.msra.mxu0 0.0
      %867 = vmatpush.msra.mxu0 0.0
      %868 = vmatpush.msra.mxu0 0.0
      %869 = vmatpush.msra.mxu0 0.0
      %870 = vmatpush.msra.mxu0 0.0
      %871 = vmatpush.msra.mxu0 %v823
      %872 = vmatmul.f32.gmra.mxu0 %v810
      %v873 = vpop.f32.mrf.mxu0
      %v874 = vadd.f32 0.0, %v873
      %875 = vmatmul.f32.gmra.mxu0 %v813
      %v876 = vpop.f32.mrf.mxu0
      %v877 = vadd.f32 0.0, %v876
      %878 = vmatmul.f32.gmra.mxu0 %v816
      %v879 = vpop.f32.mrf.mxu0
      %v880 = vadd.f32 0.0, %v879
      %881 = vmatmul.f32.gmra.mxu0 %v819
      %v882 = vpop.f32.mrf.mxu0
      %v883 = vadd.f32 0.0, %v882
      %884 = vdwg.mxu0
      %885 = vmatpush.msra.mxu0 0.0
      %886 = vmatpush.msra.mxu0 0.0
      %887 = vmatpush.msra.mxu0 0.0
      %888 = vmatpush.msra.mxu0 0.0
      %889 = vmatpush.msra.mxu0 0.0
      %890 = vmatpush.msra.mxu0 0.0
      %891 = vmatpush.msra.mxu0 0.0
      %892 = vmatpush.msra.mxu0 0.0
      %893 = vmatpush.msra.mxu0 0.0
      %894 = vmatpush.msra.mxu0 0.0
      %895 = vmatpush.msra.mxu0 0.0
      %896 = vmatpush.msra.mxu0 0.0
      %897 = vmatpush.msra.mxu0 0.0
      %898 = vmatpush.msra.mxu0 0.0
      %899 = vmatpush.msra.mxu0 0.0
      %900 = vmatpush.msra.mxu0 %v825
      %901 = vmatmul.f32.gmra.mxu0 %v810
      %v902 = vpop.f32.mrf.mxu0
      %v903 = vadd.f32 0.0, %v902
      %904 = vmatmul.f32.gmra.mxu0 %v813
      %v905 = vpop.f32.mrf.mxu0
      %v906 = vadd.f32 0.0, %v905
      %907 = vmatmul.f32.gmra.mxu0 %v816
      %v908 = vpop.f32.mrf.mxu0
      %v909 = vadd.f32 0.0, %v908
      %910 = vmatmul.f32.gmra.mxu0 %v819
      %v911 = vpop.f32.mrf.mxu0
      %v912 = vadd.f32 0.0, %v911
      %913 = vdwg.mxu0
      %v914 = vadd.f32 %v773, %v845
      %v915 = vadd.f32 %v774, %v874
      %v916 = vadd.f32 %v775, %v903
      %v917 = vadd.f32 %v776, %v848
      %v918 = vadd.f32 %v777, %v877
      %v919 = vadd.f32 %v778, %v906
      %v920 = vadd.f32 %v779, %v851
      %v921 = vadd.f32 %v780, %v880
      %v922 = vadd.f32 %v781, %v909
      %v923 = vadd.f32 %v782, %v854
      %v924 = vadd.f32 %v783, %v883
      %v925 = vadd.f32 %v784, %v912
      %s926 = scalar_lea.vmem %s1, 160
      %v927 = vld [vmem:[%s926] sm:$0xff]
      %v928 = vld [vmem:[%s926 + $0x8] sm:$0xff]
      %v929 = vld [vmem:[%s926 + $0x10] sm:$0xff]
      %v930 = vld [vmem:[%s926 + $0x18] sm:$0xff]
      %931 = vst [vmem:[#allocation1] ss:$2 sm:$0xff] %v253
      %s932 = scalar_lea.vmem [#allocation1], 16
      %933 = vst [vmem:[%s932] ss:$2 sm:$0xff] %v254
      %v934 = vld.sshfl [vmem:[#allocation1] sm:$0xff pattern:$0x75316420]
      %v935 = vld.sshfl [vmem:[#allocation1 + $0x8] sm:$0xff pattern:$0x75316420]
      %v936 = vld.sshfl [vmem:[#allocation1 + $0x10] sm:$0xff pattern:$0x75316420]
      %v937 = vld.sshfl [vmem:[#allocation1 + $0x18] sm:$0xff pattern:$0x75316420]
      %938 = vrot.lane.b32.xlu0 %v934, 108
      %v939 = vpop.permute.xlu0 %938
      %940 = vrot.lane.b32.xlu0 %v935, 108
      %v941 = vpop.permute.xlu0 %940
      %942 = vrot.lane.b32.xlu0 %v936, 108
      %v943 = vpop.permute.xlu0 %942
      %944 = vrot.lane.b32.xlu0 %v937, 108
      %v945 = vpop.permute.xlu0 %944
      %vm946 = vcmask 883712
      %v947 = vsel %vm946, %v939, %v941
      %v948 = vsel %vm946, %v941, %v943
      %v949 = vsel %vm946, %v943, %v945
      %v951 = vsel %vm285, %v927, 0
      %v954 = vsel %vm285, %v928, 0
      %v957 = vsel %vm285, %v929, 0
      %v960 = vsel %vm285, %v930, 0
      %v962 = vsel %vm298, %v947, 0
      %v964 = vsel %vm298, %v948, 0
      %v966 = vsel %vm298, %v949, 0
      %968 = vmatpush.msra.mxu0 0.0
      %969 = vmatpush.msra.mxu0 0.0
      %970 = vmatpush.msra.mxu0 0.0
      %971 = vmatpush.msra.mxu0 0.0
      %972 = vmatpush.msra.mxu0 0.0
      %973 = vmatpush.msra.mxu0 0.0
      %974 = vmatpush.msra.mxu0 0.0
      %975 = vmatpush.msra.mxu0 0.0
      %976 = vmatpush.msra.mxu0 0.0
      %977 = vmatpush.msra.mxu0 0.0
      %978 = vmatpush.msra.mxu0 0.0
      %979 = vmatpush.msra.mxu0 0.0
      %980 = vmatpush.msra.mxu0 0.0
      %981 = vmatpush.msra.mxu0 0.0
      %982 = vmatpush.msra.mxu0 0.0
      %983 = vmatpush.msra.mxu0 %v962
      %984 = vmatmul.f32.gmra.mxu0 %v951
      %v985 = vpop.f32.mrf.mxu0
      %v986 = vadd.f32 0.0, %v985
      %987 = vmatmul.f32.gmra.mxu0 %v954
      %v988 = vpop.f32.mrf.mxu0
      %v989 = vadd.f32 0.0, %v988
      %990 = vmatmul.f32.gmra.mxu0 %v957
      %v991 = vpop.f32.mrf.mxu0
      %v992 = vadd.f32 0.0, %v991
      %993 = vmatmul.f32.gmra.mxu0 %v960
      %v994 = vpop.f32.mrf.mxu0
      %v995 = vadd.f32 0.0, %v994
      %996 = vdwg.mxu0
      %997 = vmatpush.msra.mxu0 0.0
      %998 = vmatpush.msra.mxu0 0.0
      %999 = vmatpush.msra.mxu0 0.0
      %1000 = vmatpush.msra.mxu0 0.0
      %1001 = vmatpush.msra.mxu0 0.0
      %1002 = vmatpush.msra.mxu0 0.0
      %1003 = vmatpush.msra.mxu0 0.0
      %1004 = vmatpush.msra.mxu0 0.0
      %1005 = vmatpush.msra.mxu0 0.0
      %1006 = vmatpush.msra.mxu0 0.0
      %1007 = vmatpush.msra.mxu0 0.0
      %1008 = vmatpush.msra.mxu0 0.0
      %1009 = vmatpush.msra.mxu0 0.0
      %1010 = vmatpush.msra.mxu0 0.0
      %1011 = vmatpush.msra.mxu0 0.0
      %1012 = vmatpush.msra.mxu0 %v964
      %1013 = vmatmul.f32.gmra.mxu0 %v951
      %v1014 = vpop.f32.mrf.mxu0
      %v1015 = vadd.f32 0.0, %v1014
      %1016 = vmatmul.f32.gmra.mxu0 %v954
      %v1017 = vpop.f32.mrf.mxu0
      %v1018 = vadd.f32 0.0, %v1017
      %1019 = vmatmul.f32.gmra.mxu0 %v957
      %v1020 = vpop.f32.mrf.mxu0
      %v1021 = vadd.f32 0.0, %v1020
      %1022 = vmatmul.f32.gmra.mxu0 %v960
      %v1023 = vpop.f32.mrf.mxu0
      %v1024 = vadd.f32 0.0, %v1023
      %1025 = vdwg.mxu0
      %1026 = vmatpush.msra.mxu0 0.0
      %1027 = vmatpush.msra.mxu0 0.0
      %1028 = vmatpush.msra.mxu0 0.0
      %1029 = vmatpush.msra.mxu0 0.0
      %1030 = vmatpush.msra.mxu0 0.0
      %1031 = vmatpush.msra.mxu0 0.0
      %1032 = vmatpush.msra.mxu0 0.0
      %1033 = vmatpush.msra.mxu0 0.0
      %1034 = vmatpush.msra.mxu0 0.0
      %1035 = vmatpush.msra.mxu0 0.0
      %1036 = vmatpush.msra.mxu0 0.0
      %1037 = vmatpush.msra.mxu0 0.0
      %1038 = vmatpush.msra.mxu0 0.0
      %1039 = vmatpush.msra.mxu0 0.0
      %1040 = vmatpush.msra.mxu0 0.0
      %1041 = vmatpush.msra.mxu0 %v966
      %1042 = vmatmul.f32.gmra.mxu0 %v951
      %v1043 = vpop.f32.mrf.mxu0
      %v1044 = vadd.f32 0.0, %v1043
      %1045 = vmatmul.f32.gmra.mxu0 %v954
      %v1046 = vpop.f32.mrf.mxu0
      %v1047 = vadd.f32 0.0, %v1046
      %1048 = vmatmul.f32.gmra.mxu0 %v957
      %v1049 = vpop.f32.mrf.mxu0
      %v1050 = vadd.f32 0.0, %v1049
      %1051 = vmatmul.f32.gmra.mxu0 %v960
      %v1052 = vpop.f32.mrf.mxu0
      %v1053 = vadd.f32 0.0, %v1052
      %1054 = vdwg.mxu0
      %v1055 = vadd.f32 %v914, %v986
      %v1056 = vadd.f32 %v915, %v1015
      %v1057 = vadd.f32 %v916, %v1044
      %v1058 = vadd.f32 %v917, %v989
      %v1059 = vadd.f32 %v918, %v1018
      %v1060 = vadd.f32 %v919, %v1047
      %v1061 = vadd.f32 %v920, %v992
      %v1062 = vadd.f32 %v921, %v1021
      %v1063 = vadd.f32 %v922, %v1050
      %v1064 = vadd.f32 %v923, %v995
      %v1065 = vadd.f32 %v924, %v1024
      %v1066 = vadd.f32 %v925, %v1053
      %s1067 = scalar_lea.vmem %s1, 192
      %v1068 = vld [vmem:[%s1067] sm:$0xff]
      %v1069 = vld [vmem:[%s1067 + $0x8] sm:$0xff]
      %v1070 = vld [vmem:[%s1067 + $0x10] sm:$0xff]
      %v1071 = vld [vmem:[%s1067 + $0x18] sm:$0xff]
      %1072 = vst [vmem:[#allocation1] ss:$2 sm:$0xff] %v253
      %s1073 = scalar_lea.vmem [#allocation1], 16
      %1074 = vst [vmem:[%s1073] ss:$2 sm:$0xff] %v254
      %v1075 = vld.sshfl [vmem:[#allocation1] sm:$0xff pattern:$0x75316420]
      %v1076 = vld.sshfl [vmem:[#allocation1 + $0x8] sm:$0xff pattern:$0x75316420]
      %v1077 = vld.sshfl [vmem:[#allocation1 + $0x10] sm:$0xff pattern:$0x75316420]
      %v1078 = vld.sshfl [vmem:[#allocation1 + $0x18] sm:$0xff pattern:$0x75316420]
      %1079 = vrot.lane.b32.xlu0 %v1075, 92
      %v1080 = vpop.permute.xlu0 %1079
      %1081 = vrot.lane.b32.xlu0 %v1076, 92
      %v1082 = vpop.permute.xlu0 %1081
      %1083 = vrot.lane.b32.xlu0 %v1077, 92
      %v1084 = vpop.permute.xlu0 %1083
      %1085 = vrot.lane.b32.xlu0 %v1078, 92
      %v1086 = vpop.permute.xlu0 %1085
      %vm1087 = vcmask 752640
      %v1088 = vsel %vm1087, %v1080, %v1082
      %v1089 = vsel %vm1087, %v1082, %v1084
      %v1090 = vsel %vm1087, %v1084, %v1086
      %v1092 = vsel %vm285, %v1068, 0
      %v1095 = vsel %vm285, %v1069, 0
      %v1098 = vsel %vm285, %v1070, 0
      %v1101 = vsel %vm285, %v1071, 0
      %v1103 = vsel %vm298, %v1088, 0
      %v1105 = vsel %vm298, %v1089, 0
      %v1107 = vsel %vm298, %v1090, 0
      %1109 = vmatpush.msra.mxu0 0.0
      %1110 = vmatpush.msra.mxu0 0.0
      %1111 = vmatpush.msra.mxu0 0.0
      %1112 = vmatpush.msra.mxu0 0.0
      %1113 = vmatpush.msra.mxu0 0.0
      %1114 = vmatpush.msra.mxu0 0.0
      %1115 = vmatpush.msra.mxu0 0.0
      %1116 = vmatpush.msra.mxu0 0.0
      %1117 = vmatpush.msra.mxu0 0.0
      %1118 = vmatpush.msra.mxu0 0.0
      %1119 = vmatpush.msra.mxu0 0.0
      %1120 = vmatpush.msra.mxu0 0.0
      %1121 = vmatpush.msra.mxu0 0.0
      %1122 = vmatpush.msra.mxu0 0.0
      %1123 = vmatpush.msra.mxu0 0.0
      %1124 = vmatpush.msra.mxu0 %v1103
      %1125 = vmatmul.f32.gmra.mxu0 %v1092
      %v1126 = vpop.f32.mrf.mxu0
      %v1127 = vadd.f32 0.0, %v1126
      %1128 = vmatmul.f32.gmra.mxu0 %v1095
      %v1129 = vpop.f32.mrf.mxu0
      %v1130 = vadd.f32 0.0, %v1129
      %1131 = vmatmul.f32.gmra.mxu0 %v1098
      %v1132 = vpop.f32.mrf.mxu0
      %v1133 = vadd.f32 0.0, %v1132
      %1134 = vmatmul.f32.gmra.mxu0 %v1101
      %v1135 = vpop.f32.mrf.mxu0
      %v1136 = vadd.f32 0.0, %v1135
      %1137 = vdwg.mxu0
      %1138 = vmatpush.msra.mxu0 0.0
      %1139 = vmatpush.msra.mxu0 0.0
      %1140 = vmatpush.msra.mxu0 0.0
      %1141 = vmatpush.msra.mxu0 0.0
      %1142 = vmatpush.msra.mxu0 0.0
      %1143 = vmatpush.msra.mxu0 0.0
      %1144 = vmatpush.msra.mxu0 0.0
      %1145 = vmatpush.msra.mxu0 0.0
      %1146 = vmatpush.msra.mxu0 0.0
      %1147 = vmatpush.msra.mxu0 0.0
      %1148 = vmatpush.msra.mxu0 0.0
      %1149 = vmatpush.msra.mxu0 0.0
      %1150 = vmatpush.msra.mxu0 0.0
      %1151 = vmatpush.msra.mxu0 0.0
      %1152 = vmatpush.msra.mxu0 0.0
      %1153 = vmatpush.msra.mxu0 %v1105
      %1154 = vmatmul.f32.gmra.mxu0 %v1092
      %v1155 = vpop.f32.mrf.mxu0
      %v1156 = vadd.f32 0.0, %v1155
      %1157 = vmatmul.f32.gmra.mxu0 %v1095
      %v1158 = vpop.f32.mrf.mxu0
      %v1159 = vadd.f32 0.0, %v1158
      %1160 = vmatmul.f32.gmra.mxu0 %v1098
      %v1161 = vpop.f32.mrf.mxu0
      %v1162 = vadd.f32 0.0, %v1161
      %1163 = vmatmul.f32.gmra.mxu0 %v1101
      %v1164 = vpop.f32.mrf.mxu0
      %v1165 = vadd.f32 0.0, %v1164
      %1166 = vdwg.mxu0
      %1167 = vmatpush.msra.mxu0 0.0
      %1168 = vmatpush.msra.mxu0 0.0
      %1169 = vmatpush.msra.mxu0 0.0
      %1170 = vmatpush.msra.mxu0 0.0
      %1171 = vmatpush.msra.mxu0 0.0
      %1172 = vmatpush.msra.mxu0 0.0
      %1173 = vmatpush.msra.mxu0 0.0
      %1174 = vmatpush.msra.mxu0 0.0
      %1175 = vmatpush.msra.mxu0 0.0
      %1176 = vmatpush.msra.mxu0 0.0
      %1177 = vmatpush.msra.mxu0 0.0
      %1178 = vmatpush.msra.mxu0 0.0
      %1179 = vmatpush.msra.mxu0 0.0
      %1180 = vmatpush.msra.mxu0 0.0
      %1181 = vmatpush.msra.mxu0 0.0
      %1182 = vmatpush.msra.mxu0 %v1107
      %1183 = vmatmul.f32.gmra.mxu0 %v1092
      %v1184 = vpop.f32.mrf.mxu0
      %v1185 = vadd.f32 0.0, %v1184
      %1186 = vmatmul.f32.gmra.mxu0 %v1095
      %v1187 = vpop.f32.mrf.mxu0
      %v1188 = vadd.f32 0.0, %v1187
      %1189 = vmatmul.f32.gmra.mxu0 %v1098
      %v1190 = vpop.f32.mrf.mxu0
      %v1191 = vadd.f32 0.0, %v1190
      %1192 = vmatmul.f32.gmra.mxu0 %v1101
      %v1193 = vpop.f32.mrf.mxu0
      %v1194 = vadd.f32 0.0, %v1193
      %1195 = vdwg.mxu0
      %v1196 = vadd.f32 %v1055, %v1127
      %v1197 = vadd.f32 %v1056, %v1156
      %v1198 = vadd.f32 %v1057, %v1185
      %v1199 = vadd.f32 %v1058, %v1130
      %v1200 = vadd.f32 %v1059, %v1159
      %v1201 = vadd.f32 %v1060, %v1188
      %v1202 = vadd.f32 %v1061, %v1133
      %v1203 = vadd.f32 %v1062, %v1162
      %v1204 = vadd.f32 %v1063, %v1191
      %v1205 = vadd.f32 %v1064, %v1136
      %v1206 = vadd.f32 %v1065, %v1165
      %v1207 = vadd.f32 %v1066, %v1194
      %s1208 = scalar_lea.vmem %s1, 224
      %v1209 = vld [vmem:[%s1208] sm:$0xff]
      %v1210 = vld [vmem:[%s1208 + $0x8] sm:$0xff]
      %v1211 = vld [vmem:[%s1208 + $0x10] sm:$0xff]
      %v1212 = vld [vmem:[%s1208 + $0x18] sm:$0xff]
      %1213 = vst [vmem:[#allocation1] ss:$2 sm:$0xff] %v253
      %s1214 = scalar_lea.vmem [#allocation1], 16
      %1215 = vst [vmem:[%s1214] ss:$2 sm:$0xff] %v254
      %v1216 = vld.sshfl [vmem:[#allocation1] sm:$0xff pattern:$0x75316420]
      %v1217 = vld.sshfl [vmem:[#allocation1 + $0x8] sm:$0xff pattern:$0x75316420]
      %v1218 = vld.sshfl [vmem:[#allocation1 + $0x10] sm:$0xff pattern:$0x75316420]
      %v1219 = vld.sshfl [vmem:[#allocation1 + $0x18] sm:$0xff pattern:$0x75316420]
      %1220 = vrot.lane.b32.xlu0 %v1216, 91
      %v1221 = vpop.permute.xlu0 %1220
      %1222 = vrot.lane.b32.xlu0 %v1217, 91
      %v1223 = vpop.permute.xlu0 %1222
      %1224 = vrot.lane.b32.xlu0 %v1218, 91
      %v1225 = vpop.permute.xlu0 %1224
      %1226 = vrot.lane.b32.xlu0 %v1219, 91
      %v1227 = vpop.permute.xlu0 %1226
      %vm1228 = vcmask 744448
      %v1229 = vsel %vm1228, %v1221, %v1223
      %v1230 = vsel %vm1228, %v1223, %v1225
      %v1231 = vsel %vm1228, %v1225, %v1227
      %v1233 = vsel %vm285, %v1209, 0
      %v1236 = vsel %vm285, %v1210, 0
      %v1239 = vsel %vm285, %v1211, 0
      %v1242 = vsel %vm285, %v1212, 0
      %v1244 = vsel %vm298, %v1229, 0
      %v1246 = vsel %vm298, %v1230, 0
      %v1248 = vsel %vm298, %v1231, 0
      %1250 = vmatpush.msra.mxu0 0.0
      %1251 = vmatpush.msra.mxu0 0.0
      %1252 = vmatpush.msra.mxu0 0.0
      %1253 = vmatpush.msra.mxu0 0.0
      %1254 = vmatpush.msra.mxu0 0.0
      %1255 = vmatpush.msra.mxu0 0.0
      %1256 = vmatpush.msra.mxu0 0.0
      %1257 = vmatpush.msra.mxu0 0.0
      %1258 = vmatpush.msra.mxu0 0.0
      %1259 = vmatpush.msra.mxu0 0.0
      %1260 = vmatpush.msra.mxu0 0.0
      %1261 = vmatpush.msra.mxu0 0.0
      %1262 = vmatpush.msra.mxu0 0.0
      %1263 = vmatpush.msra.mxu0 0.0
      %1264 = vmatpush.msra.mxu0 0.0
      %1265 = vmatpush.msra.mxu0 %v1244
      %1266 = vmatmul.f32.gmra.mxu0 %v1233
      %v1267 = vpop.f32.mrf.mxu0
      %v1268 = vadd.f32 0.0, %v1267
      %1269 = vmatmul.f32.gmra.mxu0 %v1236
      %v1270 = vpop.f32.mrf.mxu0
      %v1271 = vadd.f32 0.0, %v1270
      %1272 = vmatmul.f32.gmra.mxu0 %v1239
      %v1273 = vpop.f32.mrf.mxu0
      %v1274 = vadd.f32 0.0, %v1273
      %1275 = vmatmul.f32.gmra.mxu0 %v1242
      %v1276 = vpop.f32.mrf.mxu0
      %v1277 = vadd.f32 0.0, %v1276
      %1278 = vdwg.mxu0
      %1279 = vmatpush.msra.mxu0 0.0
      %1280 = vmatpush.msra.mxu0 0.0
      %1281 = vmatpush.msra.mxu0 0.0
      %1282 = vmatpush.msra.mxu0 0.0
      %1283 = vmatpush.msra.mxu0 0.0
      %1284 = vmatpush.msra.mxu0 0.0
      %1285 = vmatpush.msra.mxu0 0.0
      %1286 = vmatpush.msra.mxu0 0.0
      %1287 = vmatpush.msra.mxu0 0.0
      %1288 = vmatpush.msra.mxu0 0.0
      %1289 = vmatpush.msra.mxu0 0.0
      %1290 = vmatpush.msra.mxu0 0.0
      %1291 = vmatpush.msra.mxu0 0.0
      %1292 = vmatpush.msra.mxu0 0.0
      %1293 = vmatpush.msra.mxu0 0.0
      %1294 = vmatpush.msra.mxu0 %v1246
      %1295 = vmatmul.f32.gmra.mxu0 %v1233
      %v1296 = vpop.f32.mrf.mxu0
      %v1297 = vadd.f32 0.0, %v1296
      %1298 = vmatmul.f32.gmra.mxu0 %v1236
      %v1299 = vpop.f32.mrf.mxu0
      %v1300 = vadd.f32 0.0, %v1299
      %1301 = vmatmul.f32.gmra.mxu0 %v1239
      %v1302 = vpop.f32.mrf.mxu0
      %v1303 = vadd.f32 0.0, %v1302
      %1304 = vmatmul.f32.gmra.mxu0 %v1242
      %v1305 = vpop.f32.mrf.mxu0
      %v1306 = vadd.f32 0.0, %v1305
      %1307 = vdwg.mxu0
      %1308 = vmatpush.msra.mxu0 0.0
      %1309 = vmatpush.msra.mxu0 0.0
      %1310 = vmatpush.msra.mxu0 0.0
      %1311 = vmatpush.msra.mxu0 0.0
      %1312 = vmatpush.msra.mxu0 0.0
      %1313 = vmatpush.msra.mxu0 0.0
      %1314 = vmatpush.msra.mxu0 0.0
      %1315 = vmatpush.msra.mxu0 0.0
      %1316 = vmatpush.msra.mxu0 0.0
      %1317 = vmatpush.msra.mxu0 0.0
      %1318 = vmatpush.msra.mxu0 0.0
      %1319 = vmatpush.msra.mxu0 0.0
      %1320 = vmatpush.msra.mxu0 0.0
      %1321 = vmatpush.msra.mxu0 0.0
      %1322 = vmatpush.msra.mxu0 0.0
      %1323 = vmatpush.msra.mxu0 %v1248
      %1324 = vmatmul.f32.gmra.mxu0 %v1233
      %v1325 = vpop.f32.mrf.mxu0
      %v1326 = vadd.f32 0.0, %v1325
      %1327 = vmatmul.f32.gmra.mxu0 %v1236
      %v1328 = vpop.f32.mrf.mxu0
      %v1329 = vadd.f32 0.0, %v1328
      %1330 = vmatmul.f32.gmra.mxu0 %v1239
      %v1331 = vpop.f32.mrf.mxu0
      %v1332 = vadd.f32 0.0, %v1331
      %1333 = vmatmul.f32.gmra.mxu0 %v1242
      %v1334 = vpop.f32.mrf.mxu0
      %v1335 = vadd.f32 0.0, %v1334
      %1336 = vdwg.mxu0
      %v1337 = vadd.f32 %v1196, %v1268
      %v1338 = vadd.f32 %v1197, %v1297
      %v1339 = vadd.f32 %v1198, %v1326
      %v1340 = vadd.f32 %v1199, %v1271
      %v1341 = vadd.f32 %v1200, %v1300
      %v1342 = vadd.f32 %v1201, %v1329
      %v1343 = vadd.f32 %v1202, %v1274
      %v1344 = vadd.f32 %v1203, %v1303
      %v1345 = vadd.f32 %v1204, %v1332
      %v1346 = vadd.f32 %v1205, %v1277
      %v1347 = vadd.f32 %v1206, %v1306
      %v1348 = vadd.f32 %v1207, %v1335
      %s1349 = scalar_lea.vmem %s1, 256
      %v1350 = vld [vmem:[%s1349] sm:$0xff]
      %v1351 = vld [vmem:[%s1349 + $0x8] sm:$0xff]
      %v1352 = vld [vmem:[%s1349 + $0x10] sm:$0xff]
      %v1353 = vld [vmem:[%s1349 + $0x18] sm:$0xff]
      %1354 = vst [vmem:[#allocation1] ss:$2 sm:$0xff] %v253
      %s1355 = scalar_lea.vmem [#allocation1], 16
      %1356 = vst [vmem:[%s1355] ss:$2 sm:$0xff] %v254
      %v1357 = vld.sshfl [vmem:[#allocation1] sm:$0xff pattern:$0x75316420]
      %v1358 = vld.sshfl [vmem:[#allocation1 + $0x8] sm:$0xff pattern:$0x75316420]
      %v1359 = vld.sshfl [vmem:[#allocation1 + $0x10] sm:$0xff pattern:$0x75316420]
      %v1360 = vld.sshfl [vmem:[#allocation1 + $0x18] sm:$0xff pattern:$0x75316420]
      %1361 = vrot.lane.b32.xlu0 %v1357, 90
      %v1362 = vpop.permute.xlu0 %1361
      %1363 = vrot.lane.b32.xlu0 %v1358, 90
      %v1364 = vpop.permute.xlu0 %1363
      %1365 = vrot.lane.b32.xlu0 %v1359, 90
      %v1366 = vpop.permute.xlu0 %1365
      %1367 = vrot.lane.b32.xlu0 %v1360, 90
      %v1368 = vpop.permute.xlu0 %1367
      %vm1369 = vcmask 736256
      %v1370 = vsel %vm1369, %v1362, %v1364
      %v1371 = vsel %vm1369, %v1364, %v1366
      %v1372 = vsel %vm1369, %v1366, %v1368
      %v1374 = vsel %vm285, %v1350, 0
      %v1377 = vsel %vm285, %v1351, 0
      %v1380 = vsel %vm285, %v1352, 0
      %v1383 = vsel %vm285, %v1353, 0
      %v1385 = vsel %vm298, %v1370, 0
      %v1387 = vsel %vm298, %v1371, 0
      %v1389 = vsel %vm298, %v1372, 0
      %1391 = vmatpush.msra.mxu0 0.0
      %1392 = vmatpush.msra.mxu0 0.0
      %1393 = vmatpush.msra.mxu0 0.0
      %1394 = vmatpush.msra.mxu0 0.0
      %1395 = vmatpush.msra.mxu0 0.0
      %1396 = vmatpush.msra.mxu0 0.0
      %1397 = vmatpush.msra.mxu0 0.0
      %1398 = vmatpush.msra.mxu0 0.0
      %1399 = vmatpush.msra.mxu0 0.0
      %1400 = vmatpush.msra.mxu0 0.0
      %1401 = vmatpush.msra.mxu0 0.0
      %1402 = vmatpush.msra.mxu0 0.0
      %1403 = vmatpush.msra.mxu0 0.0
      %1404 = vmatpush.msra.mxu0 0.0
      %1405 = vmatpush.msra.mxu0 0.0
      %1406 = vmatpush.msra.mxu0 %v1385
      %1407 = vmatmul.f32.gmra.mxu0 %v1374
      %v1408 = vpop.f32.mrf.mxu0
      %v1409 = vadd.f32 0.0, %v1408
      %1410 = vmatmul.f32.gmra.mxu0 %v1377
      %v1411 = vpop.f32.mrf.mxu0
      %v1412 = vadd.f32 0.0, %v1411
      %1413 = vmatmul.f32.gmra.mxu0 %v1380
      %v1414 = vpop.f32.mrf.mxu0
      %v1415 = vadd.f32 0.0, %v1414
      %1416 = vmatmul.f32.gmra.mxu0 %v1383
      %v1417 = vpop.f32.mrf.mxu0
      %v1418 = vadd.f32 0.0, %v1417
      %1419 = vdwg.mxu0
      %1420 = vmatpush.msra.mxu0 0.0
      %1421 = vmatpush.msra.mxu0 0.0
      %1422 = vmatpush.msra.mxu0 0.0
      %1423 = vmatpush.msra.mxu0 0.0
      %1424 = vmatpush.msra.mxu0 0.0
      %1425 = vmatpush.msra.mxu0 0.0
      %1426 = vmatpush.msra.mxu0 0.0
      %1427 = vmatpush.msra.mxu0 0.0
      %1428 = vmatpush.msra.mxu0 0.0
      %1429 = vmatpush.msra.mxu0 0.0
      %1430 = vmatpush.msra.mxu0 0.0
      %1431 = vmatpush.msra.mxu0 0.0
      %1432 = vmatpush.msra.mxu0 0.0
      %1433 = vmatpush.msra.mxu0 0.0
      %1434 = vmatpush.msra.mxu0 0.0
      %1435 = vmatpush.msra.mxu0 %v1387
      %1436 = vmatmul.f32.gmra.mxu0 %v1374
      %v1437 = vpop.f32.mrf.mxu0
      %v1438 = vadd.f32 0.0, %v1437
      %1439 = vmatmul.f32.gmra.mxu0 %v1377
      %v1440 = vpop.f32.mrf.mxu0
      %v1441 = vadd.f32 0.0, %v1440
      %1442 = vmatmul.f32.gmra.mxu0 %v1380
      %v1443 = vpop.f32.mrf.mxu0
      %v1444 = vadd.f32 0.0, %v1443
      %1445 = vmatmul.f32.gmra.mxu0 %v1383
      %v1446 = vpop.f32.mrf.mxu0
      %v1447 = vadd.f32 0.0, %v1446
      %1448 = vdwg.mxu0
      %1449 = vmatpush.msra.mxu0 0.0
      %1450 = vmatpush.msra.mxu0 0.0
      %1451 = vmatpush.msra.mxu0 0.0
      %1452 = vmatpush.msra.mxu0 0.0
      %1453 = vmatpush.msra.mxu0 0.0
      %1454 = vmatpush.msra.mxu0 0.0
      %1455 = vmatpush.msra.mxu0 0.0
      %1456 = vmatpush.msra.mxu0 0.0
      %1457 = vmatpush.msra.mxu0 0.0
      %1458 = vmatpush.msra.mxu0 0.0
      %1459 = vmatpush.msra.mxu0 0.0
      %1460 = vmatpush.msra.mxu0 0.0
      %1461 = vmatpush.msra.mxu0 0.0
      %1462 = vmatpush.msra.mxu0 0.0
      %1463 = vmatpush.msra.mxu0 0.0
      %1464 = vmatpush.msra.mxu0 %v1389
      %1465 = vmatmul.f32.gmra.mxu0 %v1374
      %v1466 = vpop.f32.mrf.mxu0
      %v1467 = vadd.f32 0.0, %v1466
      %1468 = vmatmul.f32.gmra.mxu0 %v1377
      %v1469 = vpop.f32.mrf.mxu0
      %v1470 = vadd.f32 0.0, %v1469
      %1471 = vmatmul.f32.gmra.mxu0 %v1380
      %v1472 = vpop.f32.mrf.mxu0
      %v1473 = vadd.f32 0.0, %v1472
      %1474 = vmatmul.f32.gmra.mxu0 %v1383
      %v1475 = vpop.f32.mrf.mxu0
      %v1476 = vadd.f32 0.0, %v1475
      %1477 = vdwg.mxu0
      %v1478 = vadd.f32 %v1337, %v1409
      %v1479 = vadd.f32 %v1338, %v1438
      %v1480 = vadd.f32 %v1339, %v1467
      %v1481 = vadd.f32 %v1340, %v1412
      %v1482 = vadd.f32 %v1341, %v1441
      %v1483 = vadd.f32 %v1342, %v1470
      %v1484 = vadd.f32 %v1343, %v1415
      %v1485 = vadd.f32 %v1344, %v1444
      %v1486 = vadd.f32 %v1345, %v1473
      %v1487 = vadd.f32 %v1346, %v1418
      %v1488 = vadd.f32 %v1347, %v1447
      %v1489 = vadd.f32 %v1348, %v1476
      %v1490 = vld [vmem:[%s2] sm:$0xff]
      %v1491 = vld [vmem:[%s2 + $0x8] sm:$0xff]
      %v1492 = vld [vmem:[%s2 + $0x10] sm:$0xff]
      %v1493 = vld [vmem:[%s2 + $0x18] sm:$0xff]
      %1495 = vset.pattern.permute.xlu0 0
      %1496 = vperm.xlu0 %1495, %v1490
      %v1497 = vpop.permute.xlu0 %1496
      %1500 = vset.pattern.permute.xlu0 0
      %1501 = vperm.xlu0 %1500, %v1491
      %v1502 = vpop.permute.xlu0 %1501
      %1505 = vset.pattern.permute.xlu0 0
      %1506 = vperm.xlu0 %1505, %v1492
      %v1507 = vpop.permute.xlu0 %1506
      %1510 = vset.pattern.permute.xlu0 0
      %1511 = vperm.xlu0 %1510, %v1493
      %v1512 = vpop.permute.xlu0 %1511
      %v1514 = vadd.f32 %v1478, %v1497
      %v1515 = vadd.f32 %v1479, %v1497
      %v1516 = vadd.f32 %v1480, %v1497
      %v1517 = vadd.f32 %v1481, %v1502
      %v1518 = vadd.f32 %v1482, %v1502
      %v1519 = vadd.f32 %v1483, %v1502
      %v1520 = vadd.f32 %v1484, %v1507
      %v1521 = vadd.f32 %v1485, %v1507
      %v1522 = vadd.f32 %v1486, %v1507
      %v1523 = vadd.f32 %v1487, %v1512
      %v1524 = vadd.f32 %v1488, %v1512
      %v1525 = vadd.f32 %v1489, %v1512
      %v1526 = vmax.f32 %v1514, 0.0
      %v1527 = vmax.f32 %v1515, 0.0
      %v1528 = vmax.f32 %v1516, 0.0
      %v1529 = vmax.f32 %v1517, 0.0
      %v1530 = vmax.f32 %v1518, 0.0
      %v1531 = vmax.f32 %v1519, 0.0
      %v1532 = vmax.f32 %v1520, 0.0
      %v1533 = vmax.f32 %v1521, 0.0
      %v1534 = vmax.f32 %v1522, 0.0
      %v1535 = vmax.f32 %v1523, 0.0
      %v1536 = vmax.f32 %v1524, 0.0
      %v1537 = vmax.f32 %v1525, 0.0
      %v1538 = vld [vmem:[%s3] sm:$0xff]
      %v1539 = vld [vmem:[%s4] sm:$0xff]
      %1541 = vset.pattern.permute.xlu0 0
      %1542 = vperm.xlu0 %1541, %v1539
      %v1543 = vpop.permute.xlu0 %1542
      %vm1545 = vcmask 261120
      %v1547 = vsel %vm1545, %v1538, 0
      %1549 = vmatpush.msra.mxu0 0.0
      %1550 = vmatpush.msra.mxu0 0.0
      %1551 = vmatpush.msra.mxu0 0.0
      %1552 = vmatpush.msra.mxu0 0.0
      %1553 = vmatpush.msra.mxu0 0.0
      %1554 = vmatpush.msra.mxu0 0.0
      %1555 = vmatpush.msra.mxu0 0.0
      %1556 = vmatpush.msra.mxu0 0.0
      %1557 = vmatpush.msra.mxu0 0.0
      %1558 = vmatpush.msra.mxu0 0.0
      %1559 = vmatpush.msra.mxu0 0.0
      %1560 = vmatpush.msra.mxu0 0.0
      %1561 = vmatpush.msra.mxu0 %v1535
      %1562 = vmatpush.msra.mxu0 %v1532
      %1563 = vmatpush.msra.mxu0 %v1529
      %1564 = vmatpush.msra.mxu0 %v1526
      %1565 = vmatmul.f32.gmra.mxu0 %v1547
      %v1566 = vpop.f32.mrf.mxu0
      %v1567 = vadd.f32 %v1543, %v1566
      %1568 = vdwg.mxu0
      %1569 = vmatpush.msra.mxu0 0.0
      %1570 = vmatpush.msra.mxu0 0.0
      %1571 = vmatpush.msra.mxu0 0.0
      %1572 = vmatpush.msra.mxu0 0.0
      %1573 = vmatpush.msra.mxu0 0.0
      %1574 = vmatpush.msra.mxu0 0.0
      %1575 = vmatpush.msra.mxu0 0.0
      %1576 = vmatpush.msra.mxu0 0.0
      %1577 = vmatpush.msra.mxu0 0.0
      %1578 = vmatpush.msra.mxu0 0.0
      %1579 = vmatpush.msra.mxu0 0.0
      %1580 = vmatpush.msra.mxu0 0.0
      %1581 = vmatpush.msra.mxu0 %v1536
      %1582 = vmatpush.msra.mxu0 %v1533
      %1583 = vmatpush.msra.mxu0 %v1530
      %1584 = vmatpush.msra.mxu0 %v1527
      %1585 = vmatmul.f32.gmra.mxu0 %v1547
      %v1586 = vpop.f32.mrf.mxu0
      %v1587 = vadd.f32 %v1543, %v1586
      %1588 = vdwg.mxu0
      %1589 = vmatpush.msra.mxu0 0.0
      %1590 = vmatpush.msra.mxu0 0.0
      %1591 = vmatpush.msra.mxu0 0.0
      %1592 = vmatpush.msra.mxu0 0.0
      %1593 = vmatpush.msra.mxu0 0.0
      %1594 = vmatpush.msra.mxu0 0.0
      %1595 = vmatpush.msra.mxu0 0.0
      %1596 = vmatpush.msra.mxu0 0.0
      %1597 = vmatpush.msra.mxu0 0.0
      %1598 = vmatpush.msra.mxu0 0.0
      %1599 = vmatpush.msra.mxu0 0.0
      %1600 = vmatpush.msra.mxu0 0.0
      %1601 = vmatpush.msra.mxu0 %v1537
      %1602 = vmatpush.msra.mxu0 %v1534
      %1603 = vmatpush.msra.mxu0 %v1531
      %1604 = vmatpush.msra.mxu0 %v1528
      %1605 = vmatmul.f32.gmra.mxu0 %v1547
      %v1606 = vpop.f32.mrf.mxu0
      %v1607 = vadd.f32 %v1543, %v1606
      %1608 = vdwg.mxu0
      %1609 = vst [vmem:[%s246] sm:$0xff] %v1567
      %1610 = vst [vmem:[%s246 + $0x8] sm:$0xff] %v1587
      %1611 = vst [vmem:[%s246 + $0x10] sm:$0xff] %v1607
      %s1612 = smul.u32 3, %s21
      %p1613 = scmp.lt.s32.totalorder %s20, 1
      %s1614 = scalar_select %p1613, %s20, 1
      %p1615 = scmp.lt.s32.totalorder %s1612, 2
      %s1616 = scalar_select %p1615, %s1612, 2
      %s1617 = smul.addr %s1614, 3
      %s1618 = sadd.s32 %s1616, %s1617
      %s1619 = smul.addr %s1618, 8
      %s1620 = scalar_lea.vmem %s5, %s1619
      // Predicated region
      $region41: #{segment_head_forward.1} parent=39 // pred_check
        %p1621 = pneg %p158
      $region42: #{segment_head_forward.1} parent=39 // pred_check_branch
        %1623 = sbr.rel (%p1621) target = $region44
      $region43: #{segment_head_forward.1} parent=39 // pred_region
        %s1624 = smul.u32 3, %s21
      $region44: #{segment_head_forward.1} parent=39 // pred_fallthru
        _
    $region40: #{segment_head_forward.1} parent=5 // pred_fallthru
      _
    %p1625 = scmp.le.s32.totalorder 2, %s11
    // Predicated region
    $region45: #{segment_head_forward.1} parent=5 // pred_check
      %p1626 = pneg %p1625
    $region46: #{segment_head_forward.1} parent=5 // pred_check_branch
      %1628 = sbr.rel (%p1626) target = $region48
    $region47: #{segment_head_forward.1} parent=5 // pred_region
      %s1629 = ssub.s32 %s11, 2
      // Predicated region
      $region49: #{segment_head_forward.1} parent=47 // pred_check
        %p1630 = pneg %p164
      $region50: #{segment_head_forward.1} parent=47 // pred_check_branch
        %1632 = sbr.rel (%p1630) target = $region52
      $region51: #{segment_head_forward.1} parent=47 // pred_region
        %s1633 = smul.u32 3, %s23
        %p1634 = scmp.lt.s32.totalorder %s22, 1
        %s1635 = scalar_select %p1634, %s22, 1
        %p1636 = scmp.lt.s32.totalorder %s1633, 2
        %s1637 = scalar_select %p1636, %s1633, 2
        %s1638 = smul.addr %s1635, 3
        %s1639 = sadd.s32 %s1637, %s1638
        %s1640 = smul.addr %s1639, 8
        %s1641 = scalar_lea.vmem %s5, %s1640
      $region52: #{segment_head_forward.1} parent=47 // pred_fallthru
        _
    $region48: #{segment_head_forward.1} parent=5 // pred_fallthru
      _
  $region6: #{segment_head_forward.1} parent=0 // loop_footer
    %s15 = sadd.s32 1, %s11
  $region7: #{segment_head_forward.1} parent=0 // loop_footer_branch
    %10 = sbr.rel target = $region3
  $region8: #{segment_head_forward.1} parent=0 // loop_exit
    _

</llo_original>
